<compile_context>
chip_gen: v5e
topology: v5e:2x2
jax: 0.10.0
libtpu: 0.0.40
codegen_flags: <defaults>
</compile_context>

<pallas_src>
import functools

import numpy as np

import jax
import jax.numpy as jnp
from jax.experimental import pallas as pl
from jax.experimental.pallas import tpu as pltpu


def make_divisible(v, divisor=8, min_val=None):
    if min_val is None:
        min_val = divisor
    new_v = max(min_val, int(v + divisor / 2) // divisor * divisor)
    if new_v < 0.9 * v:
        new_v += divisor
    return new_v


def round_up(x, m):
    return (x + m - 1) // m * m


def shuffle_perm(c):
    """perm[p] = logical (post channel-shuffle, groups=2) channel held at
    physical slot p when a unit stores [branch1 | branch2] un-interleaved."""
    p = np.arange(c)
    return np.where(p < c // 2, 2 * p, 2 * (p - c // 2) + 1)


def tap_invmask_np(h, w, stride, ho, wo):
    """(ho*wo, 9) float: 1 where the 3x3 / pad-1 tap lands OUTSIDE the true
    h x w image (ho/wo may include extra width-padded output columns)."""
    oh, ow = np.meshgrid(np.arange(ho), np.arange(wo), indexing="ij")
    oh = oh.reshape(-1)
    ow = ow.reshape(-1)
    cols = []
    for ki in range(3):
        for kj in range(3):
            ih = oh * stride + ki - 1
            iw = ow * stride + kj - 1
            valid = (ih >= 0) & (ih < h) & (iw >= 0) & (iw < w)
            cols.append(~valid)
    return np.stack(cols, axis=1).astype(np.float32)


# --------------------------- host-side data prep -----------------------------

def pad_width(x, w_new):
    n, h, w, c = x.shape
    if w_new == w:
        return x
    return jnp.pad(x, ((0, 0), (0, 0), (0, w_new - w), (0, 0)))


def pad1(x):
    return jnp.pad(x, ((0, 0), (1, 1), (1, 1), (0, 0)))


def to_phases(x):
    """NHWC (even H, W) -> (N, 4*(H//2+1), W//2+1, C): the four even/odd
    row/col phases of the zero-padded (pad=1) image stacked along rows, so a
    stride-2 3x3 tap becomes a static, unstrided slice inside the kernel."""
    n, h, w, c = x.shape
    assert h % 2 == 0 and w % 2 == 0
    xp = pad1(x)
    ph = [xp[:, 0::2, 0::2, :], xp[:, 0::2, 1::2, :],
          xp[:, 1::2, 0::2, :], xp[:, 1::2, 1::2, :]]
    return jnp.concatenate(ph, axis=1)


# ------------------------------ Pallas kernels --------------------------------

def _relu6(x):
    return jnp.clip(x, 0.0, 6.0)


def _taps_s1(x, h, w, c):
    # x: (h+2, w+2, c) zero-padded slab -> 9 tap matrices of shape (h*w, c)
    return [x[ki:ki + h, kj:kj + w, :].reshape(h * w, c)
            for ki in range(3) for kj in range(3)]


def _taps_s2(x, ho, wo, c):
    # x: (4*(ho+1), wo+1, c) phase slab -> 9 tap matrices of shape (ho*wo, c)
    hp = ho + 1
    taps = []
    for ki in range(3):
        for kj in range(3):
            r0 = (2 * (ki % 2) + (kj % 2)) * hp + ki // 2
            c0 = kj // 2
            taps.append(x[r0:r0 + ho, c0:c0 + wo, :].reshape(ho * wo, c))
    return taps


def _stem_kernel(x_ref, w_ref, b_ref, o_ref, *, ho, wo, cin, stride):
    # 3x3 conv (+ folded BN) + ReLU6, taps built in VMEM.
    x = x_ref[0]
    taps = _taps_s2(x, ho, wo, cin) if stride == 2 else _taps_s1(x, ho, wo, cin)
    cout = b_ref.shape[-1]
    acc = jnp.zeros((ho * wo, cout), jnp.float32)
    for t in range(9):
        acc = acc + jnp.dot(taps[t], w_ref[t], preferred_element_type=jnp.float32)
    o_ref[0] = _relu6(acc + b_ref[...]).astype(o_ref.dtype)


def _maxpool_kernel(x_ref, o_ref, *, ho, wo, c):
    x = x_ref[0]
    taps = _taps_s2(x, ho, wo, c)
    m = taps[0]
    for t in range(1, 9):
        m = jnp.maximum(m, taps[t])          # max is exact in bf16
    o_ref[0] = m.astype(o_ref.dtype)


def _dw_main_branch(taps, im_ref, w1_ref, b1_ref, dww_ref, crh_ref, dwb_ref,
                    mo, cmid):
    """pw1 (+BN+ReLU6) -> dw3x3 (+BN): all nine taps in one tall MXU matmul,
    plus one tiny padding-correction matmul.  Returns f32 (mo, cmid)."""
    xt = jnp.concatenate(taps, axis=0)                    # (9*mo, cin)
    y = jnp.dot(xt, w1_ref[...], preferred_element_type=jnp.float32)
    y = _relu6(y + b1_ref[...])                           # (9*mo, cmid)
    acc = jnp.zeros((mo, cmid), jnp.float32)
    for t in range(9):
        acc = acc + y[t * mo:(t + 1) * mo, :] * dww_ref[t:t + 1, :]
    corr = jnp.dot(im_ref[...], crh_ref[...], preferred_element_type=jnp.float32)
    return acc - corr + dwb_ref[...]


def _block_s1_kernel(x_ref, im_ref, w1_ref, b1_ref, dww_ref, crh_ref, dwb_ref,
                     w2_ref, b2_ref, gate_ref, o_ref, *, h, w, cin, cmid):
    """Fused stride-1 ShuffleNetV2 unit (split + shuffle folded into weights)."""
    x = x_ref[0]                                          # (h+2, w+2, cin) bf16
    mo = h * w
    taps = _taps_s1(x, h, w, cin)
    acc = _dw_main_branch(taps, im_ref, w1_ref, b1_ref, dww_ref, crh_ref,
                          dwb_ref, mo, cmid)
    # pw2 with its columns scattered onto the branch-2 physical output slots
    # (zero columns / zero bias at passthrough slots -> relu6(0) == 0 there).
    main = _relu6(jnp.dot(acc.astype(jnp.bfloat16), w2_ref[...],
                          preferred_element_type=jnp.float32) + b2_ref[...])
    out = taps[4].astype(jnp.float32) * gate_ref[...] + main
    o_ref[0] = out.astype(o_ref.dtype)                    # one lane-dense store


def _block_s2_kernel(x_ref, im_ref, w1_ref, b1_ref, dww_ref, crh_ref, dwb_ref,
                     w2_ref, b2_ref, pdww_ref, pdwb_ref, wp_ref, bp_ref, o_ref,
                     *, ho, wo, cin, cmid):
    """Fused stride-2 ShuffleNetV2 unit (both branches, shuffle folded away)."""
    x = x_ref[0]                                          # (4*(ho+1), wo+1, cin)
    mo = ho * wo
    taps = _taps_s2(x, ho, wo, cin)
    acc_m = _dw_main_branch(taps, im_ref, w1_ref, b1_ref, dww_ref, crh_ref,
                            dwb_ref, mo, cmid)
    acc_p = jnp.zeros((mo, cin), jnp.float32)
    for t in range(9):                                    # projection dw (s2)
        acc_p = acc_p + taps[t].astype(jnp.float32) * pdww_ref[t:t + 1, :]
    acc_p = acc_p + pdwb_ref[...]
    main = _relu6(jnp.dot(acc_m.astype(jnp.bfloat16), w2_ref[...],
                          preferred_element_type=jnp.float32) + b2_ref[...])
    proj = _relu6(jnp.dot(acc_p.astype(jnp.bfloat16), wp_ref[...],
                          preferred_element_type=jnp.float32) + bp_ref[...])
    o_ref[0] = jnp.concatenate([proj, main], axis=-1).astype(o_ref.dtype)


def _head_kernel(x_ref, wf_ref, bf_ref, o_ref):
    """conv_final (1x1 + folded BN + ReLU6) + global average pool (per image)."""
    x = x_ref[0]                                          # (H*W, Cpre) bf16
    h = _relu6(jnp.dot(x, wf_ref[...], preferred_element_type=jnp.float32)
               + bf_ref[...])
    o_ref[...] = jnp.mean(h, axis=0, keepdims=True).astype(o_ref.dtype)


def _classifier_kernel(x_ref, w_ref, b_ref, o_ref):
    """Classifier Linear over the whole batch at once."""
    o_ref[...] = (jnp.dot(x_ref[...], w_ref[...],
                          preferred_element_type=jnp.float32) + b_ref[...])


# ------------------------------ pallas wrappers --------------------------------

_PARALLEL = pltpu.CompilerParams(dimension_semantics=("parallel",))


def _bcast_spec(shape):
    nd = len(shape)
    return pl.BlockSpec(shape, lambda n, _nd=nd: (0,) * _nd)


def _batch_spec(shape):
    nd = len(shape)
    return pl.BlockSpec(shape, lambda n, _nd=nd: (n,) + (0,) * (_nd - 1))


def stem_forward(x, p, stride):
    n, h, w, _ = x.shape
    cin = p["w"].shape[1]                    # input channels padded to 8
    c0 = p["w"].shape[2]
    x = jnp.pad(x, ((0, 0), (0, 0), (0, 0), (0, cin - x.shape[-1])))
    if stride == 2:
        ho, wo_true = h // 2, w // 2
        wo = round_up(wo_true, 8)
        xin = to_phases(pad_width(x, 2 * wo))
    else:
        ho, wo_true = h, w
        wo = round_up(w, 8)
        xin = pad1(pad_width(x, wo))
    mo = ho * wo
    out = pl.pallas_call(
        functools.partial(_stem_kernel, ho=ho, wo=wo, cin=cin, stride=stride),
        out_shape=jax.ShapeDtypeStruct((n, mo, c0), jnp.bfloat16),
        grid=(n,),
        in_specs=[_batch_spec((1,) + xin.shape[1:]),
                  _bcast_spec(p["w"].shape), _bcast_spec(p["b"].shape)],
        out_specs=_batch_spec((1, mo, c0)),
        compiler_params=_PARALLEL,
    )(xin, p["w"], p["b"])
    return out.reshape(n, ho, wo, c0)[:, :, :wo_true, :]


def maxpool_3x3_s2(x):
    n, h, w, c = x.shape
    ho, wo_true = h // 2, w // 2
    wo = round_up(wo_true, 8)
    xin = to_phases(pad_width(x, 2 * wo))
    mo = ho * wo
    out = pl.pallas_call(
        functools.partial(_maxpool_kernel, ho=ho, wo=wo, c=c),
        out_shape=jax.ShapeDtypeStruct((n, mo, c), jnp.bfloat16),
        grid=(n,),
        in_specs=[_batch_spec((1,) + xin.shape[1:])],
        out_specs=_batch_spec((1, mo, c)),
        compiler_params=_PARALLEL,
    )(xin)
    return out.reshape(n, ho, wo, c)[:, :, :wo_true, :]


def fused_shuffle_block(x, p):
    n, h, w, cin = x.shape
    stride, cmid = p["stride"], p["cmid"]
    cout = 2 * cmid
    if stride == 1:
        ho, wo_true = h, w
        wo = round_up(w, 8)
        xin = pad1(pad_width(x, wo))
        kern = functools.partial(_block_s1_kernel, h=h, w=wo, cin=cin, cmid=cmid)
        wargs = (p["w1"], p["b1"], p["dww"], p["crh"], p["dwb"],
                 p["w2"], p["b2"], p["gate"])
    else:
        ho, wo_true = h // 2, w // 2
        wo = round_up(wo_true, 8)
        xin = to_phases(pad_width(x, 2 * wo))
        kern = functools.partial(_block_s2_kernel, ho=ho, wo=wo, cin=cin,
                                 cmid=cmid)
        wargs = (p["w1"], p["b1"], p["dww"], p["crh"], p["dwb"],
                 p["w2"], p["b2"], p["pdww"], p["pdwb"], p["wp"], p["bp"])
    mo = ho * wo
    invmask = jnp.asarray(tap_invmask_np(h, w, stride, ho, wo), jnp.bfloat16)
    args = (xin, invmask) + wargs
    in_specs = ([_batch_spec((1,) + xin.shape[1:])]
                + [_bcast_spec(a.shape) for a in args[1:]])
    out = pl.pallas_call(
        kern,
        out_shape=jax.ShapeDtypeStruct((n, mo, cout), jnp.bfloat16),
        grid=(n,),
        in_specs=in_specs,
        out_specs=_batch_spec((1, mo, cout)),
        compiler_params=_PARALLEL,
    )(*args)
    return out.reshape(n, ho, wo, cout)[:, :, :wo_true, :]


def head_forward(x, p):
    n, h, w, c = x.shape
    cf = p["wf"].shape[1]
    x3 = x.reshape(n, h * w, c)
    return pl.pallas_call(
        _head_kernel,
        out_shape=jax.ShapeDtypeStruct((n, cf), jnp.float32),
        grid=(n,),
        in_specs=[_batch_spec((1, h * w, c)),
                  _bcast_spec(p["wf"].shape), _bcast_spec(p["bf"].shape)],
        out_specs=pl.BlockSpec((1, cf), lambda i: (i, 0)),
        compiler_params=_PARALLEL,
    )(x3, p["wf"], p["bf"])


def classifier_forward(pooled, p):
    n, c = pooled.shape
    ncls = p["wc"].shape[1]
    return pl.pallas_call(
        _classifier_kernel,
        out_shape=jax.ShapeDtypeStruct((n, ncls), jnp.float32),
        grid=(1,),
        in_specs=[pl.BlockSpec((n, c), lambda i: (0, 0)),
                  pl.BlockSpec(p["wc"].shape, lambda i: (0, 0)),
                  pl.BlockSpec(p["bc"].shape, lambda i: (0, 0))],
        out_specs=pl.BlockSpec((n, ncls), lambda i: (0, 0)),
    )(pooled.astype(jnp.bfloat16), p["wc"], p["bc"])


def shufflenet_v2_forward(x_nchw, params):
    x = jnp.transpose(x_nchw, (0, 2, 3, 1)).astype(jnp.bfloat16)  # NCHW -> NHWC
    x = stem_forward(x, params["stem"], params["stem_stride"])
    x = maxpool_3x3_s2(x)
    for blk in params["blocks"]:
        x = fused_shuffle_block(x, blk)
    pooled = head_forward(x, params["head"])      # (N, C_final) f32
    return classifier_forward(pooled, params["head"])


# --------------------------- deterministic parameters --------------------------

class KeyGen:
    def __init__(self, seed=0):
        self.key = jax.random.PRNGKey(seed)

    def __call__(self):
        self.key, sub = jax.random.split(self.key)
        return sub


def _bn(kg, c):
    scale = 1.0 + 0.1 * jax.random.normal(kg(), (c,), jnp.float32)
    bias = 0.1 * jax.random.normal(kg(), (c,), jnp.float32)
    return scale, bias


def _conv1x1(kg, cin, cout):
    w = jax.random.normal(kg(), (cin, cout), jnp.float32) / jnp.sqrt(float(cin))
    s, b = _bn(kg, cout)
    return w, s, b


def _dwconv(kg, c, k):
    w = jax.random.normal(kg(), (k, k, c), jnp.float32) / float(k)
    s, b = _bn(kg, c)
    return w, s, b


def init_and_prepare_params(kg, blocks, strides, channels, num_classes,
                            stem_stride=2):
    """Draw logical (PyTorch-equivalent) params and fold BN scale, channel
    shuffle and channel split into the kernel-side weights (bf16)."""
    bf16 = jnp.bfloat16
    params = {"stem_stride": stem_stride}

    # ---- stem: 3x3/s2 conv + folded BN + ReLU6 (input channels padded to 8) ----
    c0 = channels[0]
    w = 0.1 * jax.random.normal(kg(), (3, 3, 3, c0), jnp.float32)
    s, b = _bn(kg, c0)
    w = w * s[None, None, None, :]
    w8 = jnp.zeros((3, 3, 8, c0), jnp.float32).at[:, :, :3, :].set(w)
    params["stem"] = dict(w=w8.reshape(9, 8, c0).astype(bf16),
                          b=b.reshape(1, c0))

    # ---- shuffle units ----
    blks = []
    prev_perm = np.arange(channels[0])        # identity layout after the stem
    for i, depth in enumerate(blocks):
        for j in range(depth):
            stride_j = strides[i] if j == 0 else 1
            cin = channels[i] if j == 0 else channels[i + 1]
            cout = channels[i + 1]
            cmid = cout // 2
            pi = prev_perm
            p = {"stride": stride_j, "cmid": cmid}

            # main branch pw1 (+ folded BN scale, + folded input permutation)
            if stride_j == 1:
                assert cin == cout, "stride-1 shuffle unit requires C_in == C_out"
                chalf = cin // 2
                w1, s1, b1 = _conv1x1(kg, chalf, cmid)
                w1f = w1 * s1[None, :]
                rows = np.where(pi >= chalf, pi - chalf, 0)
                g1 = jnp.asarray((pi >= chalf).astype(np.float32))
                p["w1"] = (w1f[rows, :] * g1[:, None]).astype(bf16)
            else:
                w1, s1, b1 = _conv1x1(kg, cin, cmid)
                p["w1"] = ((w1 * s1[None, :])[pi, :]).astype(bf16)
            p["b1"] = b1.reshape(1, cmid)

            # main branch depthwise 3x3 (+BN) and its padding-correction matrix
            dw_w, dw_s, dw_b = _dwconv(kg, cmid, 3)
            dww = (dw_w * dw_s[None, None, :]).reshape(9, cmid)
            p["dww"] = dww
            p["dwb"] = dw_b.reshape(1, cmid)
            p["crh"] = (dww * jnp.clip(b1, 0.0, 6.0)[None, :]).astype(bf16)

            # main branch pw2 (+BN); stride-1: scatter its columns onto the
            # physical output slots and track the induced permutation.
            w2, s2, b2 = _conv1x1(kg, cmid, cmid)
            w2f = w2 * s2[None, :]
            if stride_j == 1:
                branch_slots = np.where(pi >= chalf)[0]
                p["w2"] = (jnp.zeros((cmid, cin), jnp.float32)
                           .at[:, branch_slots].set(w2f)).astype(bf16)
                p["b2"] = (jnp.zeros((cin,), jnp.float32)
                           .at[branch_slots].set(b2)).reshape(1, cin)
                p["gate"] = jnp.asarray((pi < chalf).astype(np.float32)
                                        ).reshape(1, cin)
                perm_out = np.where(pi < chalf, 2 * pi, 0)
                perm_out[branch_slots] = 2 * np.arange(cmid) + 1
            else:
                p["w2"] = w2f.astype(bf16)
                p["b2"] = b2.reshape(1, cmid)
                # projection branch: depthwise 3x3/s2 (+BN) -> 1x1 (+BN+ReLU6)
                pdw_w, pdw_s, pdw_b = _dwconv(kg, cin, 3)
                pdw = (pdw_w * pdw_s[None, None, :]).reshape(9, cin)
                p["pdww"] = pdw[:, pi]
                p["pdwb"] = pdw_b[pi].reshape(1, cin)
                wp, sp, bp = _conv1x1(kg, cin, cmid)
                p["wp"] = ((wp * sp[None, :])[pi, :]).astype(bf16)
                p["bp"] = bp.reshape(1, cmid)
                perm_out = shuffle_perm(cout)

            blks.append(p)
            prev_perm = perm_out
    params["blocks"] = blks

    # ---- head: conv_final (last unit's shuffle folded in) + GAP + Linear ----
    wf, sf, bff = _conv1x1(kg, channels[-2], channels[-1])
    params["head"] = dict(
        wf=((wf * sf[None, :])[prev_perm, :]).astype(bf16),
        bf=bff.reshape(1, channels[-1]),
        wc=(jax.random.normal(kg(), (channels[-1], num_classes), jnp.float32)
            / jnp.sqrt(float(channels[-1]))).astype(bf16),
        bc=(0.01 * jax.random.normal(kg(), (num_classes,), jnp.float32)
            ).reshape(1, num_classes))
    return params


# --------------------------------- main -----------------------------------------

if __name__ == "__main__":
    # Small synthetic configuration consistent with the module's constructor.
    blocks = [1, 1, 1, 1]
    strides = [2, 2, 1, 2]
    layer_channels = [8, 16, 32, 32, 64, 64]
    mult_ratio = 1.0
    num_classes = 10
    channels = ([layer_channels[0]]
                + [make_divisible(c * mult_ratio, 8) for c in layer_channels[1:-1]]
                + [layer_channels[-1]])

    kg = KeyGen(0)
    params = init_and_prepare_params(kg, blocks, strides, channels,
                                     num_classes, stem_stride=2)

    x = jax.random.normal(jax.random.PRNGKey(0), (2, 3, 32, 32), jnp.float32)
    logits = shufflenet_v2_forward(x, params)
    logits = jax.block_until_ready(logits)
    assert logits.shape == (2, num_classes), logits.shape
    assert bool(jnp.all(jnp.isfinite(logits)))
    print("KERNEL_OK")
</pallas_src>

<mosaic_0001>
module attributes {stable_mosaic.version = 11 : i64} {
  func.func @_stem_kernel(%arg0: i32, %arg1: memref<1x68x17x8xbf16, #tpu.memory_space<vmem>>, %arg2: memref<9x8x8xbf16, #tpu.memory_space<vmem>>, %arg3: memref<1x8xf32, #tpu.memory_space<vmem>>, %arg4: memref<1x256x8xbf16, #tpu.memory_space<vmem>>) attributes {dimension_semantics = [#tpu.dimension_semantics<parallel>], iteration_bounds = array<i64: 2>, scalar_prefetch = 0 : i64, scratch_operands = 0 : i64, tpu.core_type = #tpu.core_type<tc>, window_params = [{transform_indices = @transform_0, window_bounds = array<i64: 1, 68, 17, 8>}, {pipeline_mode = #tpu.pipeline_mode<synchronous>, transform_indices = @transform_1, window_bounds = array<i64: 9, 8, 8>}, {pipeline_mode = #tpu.pipeline_mode<synchronous>, transform_indices = @transform_2, window_bounds = array<i64: 1, 8>}, {transform_indices = @transform_3, window_bounds = array<i64: 1, 256, 8>}]} {
    %c0 = arith.constant 0 : index
    %c0_0 = arith.constant 0 : index
    %c0_1 = arith.constant 0 : index
    %c0_2 = arith.constant 0 : index
    %0 = vector.load %arg1[%c0, %c0_0, %c0_1, %c0_2] : memref<1x68x17x8xbf16, #tpu.memory_space<vmem>>, vector<1x68x17x8xbf16>
    %1 = vector.shape_cast %0 : vector<1x68x17x8xbf16> to vector<68x17x8xbf16>
    %2 = vector.extract_strided_slice %1 {offsets = [0, 0, 0], sizes = [16, 16, 8], strides = [1, 1, 1]} : vector<68x17x8xbf16> to vector<16x16x8xbf16>
    %3 = vector.shape_cast %2 : vector<16x16x8xbf16> to vector<256x8xbf16>
    %4 = vector.extract_strided_slice %1 {offsets = [17, 0, 0], sizes = [16, 16, 8], strides = [1, 1, 1]} : vector<68x17x8xbf16> to vector<16x16x8xbf16>
    %5 = vector.shape_cast %4 : vector<16x16x8xbf16> to vector<256x8xbf16>
    %6 = vector.extract_strided_slice %1 {offsets = [0, 1, 0], sizes = [16, 16, 8], strides = [1, 1, 1]} : vector<68x17x8xbf16> to vector<16x16x8xbf16>
    %7 = vector.shape_cast %6 : vector<16x16x8xbf16> to vector<256x8xbf16>
    %8 = vector.extract_strided_slice %1 {offsets = [34, 0, 0], sizes = [16, 16, 8], strides = [1, 1, 1]} : vector<68x17x8xbf16> to vector<16x16x8xbf16>
    %9 = vector.shape_cast %8 : vector<16x16x8xbf16> to vector<256x8xbf16>
    %10 = vector.extract_strided_slice %1 {offsets = [51, 0, 0], sizes = [16, 16, 8], strides = [1, 1, 1]} : vector<68x17x8xbf16> to vector<16x16x8xbf16>
    %11 = vector.shape_cast %10 : vector<16x16x8xbf16> to vector<256x8xbf16>
    %12 = vector.extract_strided_slice %1 {offsets = [34, 1, 0], sizes = [16, 16, 8], strides = [1, 1, 1]} : vector<68x17x8xbf16> to vector<16x16x8xbf16>
    %13 = vector.shape_cast %12 : vector<16x16x8xbf16> to vector<256x8xbf16>
    %14 = vector.extract_strided_slice %1 {offsets = [1, 0, 0], sizes = [16, 16, 8], strides = [1, 1, 1]} : vector<68x17x8xbf16> to vector<16x16x8xbf16>
    %15 = vector.shape_cast %14 : vector<16x16x8xbf16> to vector<256x8xbf16>
    %16 = vector.extract_strided_slice %1 {offsets = [18, 0, 0], sizes = [16, 16, 8], strides = [1, 1, 1]} : vector<68x17x8xbf16> to vector<16x16x8xbf16>
    %17 = vector.shape_cast %16 : vector<16x16x8xbf16> to vector<256x8xbf16>
    %18 = vector.extract_strided_slice %1 {offsets = [1, 1, 0], sizes = [16, 16, 8], strides = [1, 1, 1]} : vector<68x17x8xbf16> to vector<16x16x8xbf16>
    %19 = vector.shape_cast %18 : vector<16x16x8xbf16> to vector<256x8xbf16>
    %cst = arith.constant 0.000000e+00 : f32
    %20 = vector.broadcast %cst : f32 to vector<256x8xf32>
    %c0_3 = arith.constant 0 : index
    %c0_4 = arith.constant 0 : index
    %c0_5 = arith.constant 0 : index
    %21 = vector.load %arg2[%c0_3, %c0_4, %c0_5] : memref<9x8x8xbf16, #tpu.memory_space<vmem>>, vector<1x8x8xbf16>
    %22 = vector.shape_cast %21 : vector<1x8x8xbf16> to vector<8x8xbf16>
    %cst_6 = arith.constant dense<0.000000e+00> : vector<256x8xf32>
    %23 = tpu.matmul %3, %22, %cst_6 {dimension_numbers = #tpu.dot_dimension_numbers<[1], [0], [0], [1], [0, 0, 1, 1], [], []>} : vector<256x8xbf16>, vector<8x8xbf16>, vector<256x8xf32> -> vector<256x8xf32>
    %24 = arith.addf %20, %23 : vector<256x8xf32>
    %c1 = arith.constant 1 : index
    %c0_7 = arith.constant 0 : index
    %c0_8 = arith.constant 0 : index
    %25 = vector.load %arg2[%c1, %c0_7, %c0_8] : memref<9x8x8xbf16, #tpu.memory_space<vmem>>, vector<1x8x8xbf16>
    %26 = vector.shape_cast %25 : vector<1x8x8xbf16> to vector<8x8xbf16>
    %cst_9 = arith.constant dense<0.000000e+00> : vector<256x8xf32>
    %27 = tpu.matmul %5, %26, %cst_9 {dimension_numbers = #tpu.dot_dimension_numbers<[1], [0], [0], [1], [0, 0, 1, 1], [], []>} : vector<256x8xbf16>, vector<8x8xbf16>, vector<256x8xf32> -> vector<256x8xf32>
    %28 = arith.addf %24, %27 : vector<256x8xf32>
    %c2 = arith.constant 2 : index
    %c0_10 = arith.constant 0 : index
    %c0_11 = arith.constant 0 : index
    %29 = vector.load %arg2[%c2, %c0_10, %c0_11] : memref<9x8x8xbf16, #tpu.memory_space<vmem>>, vector<1x8x8xbf16>
    %30 = vector.shape_cast %29 : vector<1x8x8xbf16> to vector<8x8xbf16>
    %cst_12 = arith.constant dense<0.000000e+00> : vector<256x8xf32>
    %31 = tpu.matmul %7, %30, %cst_12 {dimension_numbers = #tpu.dot_dimension_numbers<[1], [0], [0], [1], [0, 0, 1, 1], [], []>} : vector<256x8xbf16>, vector<8x8xbf16>, vector<256x8xf32> -> vector<256x8xf32>
    %32 = arith.addf %28, %31 : vector<256x8xf32>
    %c3 = arith.constant 3 : index
    %c0_13 = arith.constant 0 : index
    %c0_14 = arith.constant 0 : index
    %33 = vector.load %arg2[%c3, %c0_13, %c0_14] : memref<9x8x8xbf16, #tpu.memory_space<vmem>>, vector<1x8x8xbf16>
    %34 = vector.shape_cast %33 : vector<1x8x8xbf16> to vector<8x8xbf16>
    %cst_15 = arith.constant dense<0.000000e+00> : vector<256x8xf32>
    %35 = tpu.matmul %9, %34, %cst_15 {dimension_numbers = #tpu.dot_dimension_numbers<[1], [0], [0], [1], [0, 0, 1, 1], [], []>} : vector<256x8xbf16>, vector<8x8xbf16>, vector<256x8xf32> -> vector<256x8xf32>
    %36 = arith.addf %32, %35 : vector<256x8xf32>
    %c4 = arith.constant 4 : index
    %c0_16 = arith.constant 0 : index
    %c0_17 = arith.constant 0 : index
    %37 = vector.load %arg2[%c4, %c0_16, %c0_17] : memref<9x8x8xbf16, #tpu.memory_space<vmem>>, vector<1x8x8xbf16>
    %38 = vector.shape_cast %37 : vector<1x8x8xbf16> to vector<8x8xbf16>
    %cst_18 = arith.constant dense<0.000000e+00> : vector<256x8xf32>
    %39 = tpu.matmul %11, %38, %cst_18 {dimension_numbers = #tpu.dot_dimension_numbers<[1], [0], [0], [1], [0, 0, 1, 1], [], []>} : vector<256x8xbf16>, vector<8x8xbf16>, vector<256x8xf32> -> vector<256x8xf32>
    %40 = arith.addf %36, %39 : vector<256x8xf32>
    %c5 = arith.constant 5 : index
    %c0_19 = arith.constant 0 : index
    %c0_20 = arith.constant 0 : index
    %41 = vector.load %arg2[%c5, %c0_19, %c0_20] : memref<9x8x8xbf16, #tpu.memory_space<vmem>>, vector<1x8x8xbf16>
    %42 = vector.shape_cast %41 : vector<1x8x8xbf16> to vector<8x8xbf16>
    %cst_21 = arith.constant dense<0.000000e+00> : vector<256x8xf32>
    %43 = tpu.matmul %13, %42, %cst_21 {dimension_numbers = #tpu.dot_dimension_numbers<[1], [0], [0], [1], [0, 0, 1, 1], [], []>} : vector<256x8xbf16>, vector<8x8xbf16>, vector<256x8xf32> -> vector<256x8xf32>
    %44 = arith.addf %40, %43 : vector<256x8xf32>
    %c6 = arith.constant 6 : index
    %c0_22 = arith.constant 0 : index
    %c0_23 = arith.constant 0 : index
    %45 = vector.load %arg2[%c6, %c0_22, %c0_23] : memref<9x8x8xbf16, #tpu.memory_space<vmem>>, vector<1x8x8xbf16>
    %46 = vector.shape_cast %45 : vector<1x8x8xbf16> to vector<8x8xbf16>
    %cst_24 = arith.constant dense<0.000000e+00> : vector<256x8xf32>
    %47 = tpu.matmul %15, %46, %cst_24 {dimension_numbers = #tpu.dot_dimension_numbers<[1], [0], [0], [1], [0, 0, 1, 1], [], []>} : vector<256x8xbf16>, vector<8x8xbf16>, vector<256x8xf32> -> vector<256x8xf32>
    %48 = arith.addf %44, %47 : vector<256x8xf32>
    %c7 = arith.constant 7 : index
    %c0_25 = arith.constant 0 : index
    %c0_26 = arith.constant 0 : index
    %49 = vector.load %arg2[%c7, %c0_25, %c0_26] : memref<9x8x8xbf16, #tpu.memory_space<vmem>>, vector<1x8x8xbf16>
    %50 = vector.shape_cast %49 : vector<1x8x8xbf16> to vector<8x8xbf16>
    %cst_27 = arith.constant dense<0.000000e+00> : vector<256x8xf32>
    %51 = tpu.matmul %17, %50, %cst_27 {dimension_numbers = #tpu.dot_dimension_numbers<[1], [0], [0], [1], [0, 0, 1, 1], [], []>} : vector<256x8xbf16>, vector<8x8xbf16>, vector<256x8xf32> -> vector<256x8xf32>
    %52 = arith.addf %48, %51 : vector<256x8xf32>
    %c8 = arith.constant 8 : index
    %c0_28 = arith.constant 0 : index
    %c0_29 = arith.constant 0 : index
    %53 = vector.load %arg2[%c8, %c0_28, %c0_29] : memref<9x8x8xbf16, #tpu.memory_space<vmem>>, vector<1x8x8xbf16>
    %54 = vector.shape_cast %53 : vector<1x8x8xbf16> to vector<8x8xbf16>
    %cst_30 = arith.constant dense<0.000000e+00> : vector<256x8xf32>
    %55 = tpu.matmul %19, %54, %cst_30 {dimension_numbers = #tpu.dot_dimension_numbers<[1], [0], [0], [1], [0, 0, 1, 1], [], []>} : vector<256x8xbf16>, vector<8x8xbf16>, vector<256x8xf32> -> vector<256x8xf32>
    %56 = arith.addf %52, %55 : vector<256x8xf32>
    %c0_31 = arith.constant 0 : index
    %c0_32 = arith.constant 0 : index
    %57 = vector.load %arg3[%c0_31, %c0_32] : memref<1x8xf32, #tpu.memory_space<vmem>>, vector<1x8xf32>
    %58 = vector.broadcast %57 : vector<1x8xf32> to vector<256x8xf32>
    %59 = arith.addf %56, %58 : vector<256x8xf32>
    %cst_33 = arith.constant 0.000000e+00 : f32
    %cst_34 = arith.constant 6.000000e+00 : f32
    %60 = vector.broadcast %cst_33 : f32 to vector<256x8xf32>
    %61 = arith.maximumf %60, %59 : vector<256x8xf32>
    %62 = vector.broadcast %cst_34 : f32 to vector<256x8xf32>
    %63 = arith.minimumf %62, %61 : vector<256x8xf32>
    %64 = arith.truncf %63 : vector<256x8xf32> to vector<256x8xbf16>
    %c0_35 = arith.constant 0 : index
    %c0_36 = arith.constant 0 : index
    %c0_37 = arith.constant 0 : index
    %65 = vector.load %arg4[%c0_35, %c0_36, %c0_37] : memref<1x256x8xbf16, #tpu.memory_space<vmem>>, vector<1x256x8xbf16>
    %66 = vector.shape_cast %65 : vector<1x256x8xbf16> to vector<256x8xbf16>
    %67 = vector.shape_cast %64 : vector<256x8xbf16> to vector<1x256x8xbf16>
    tpu.vector_store %arg4[%c0_35, %c0_36, %c0_37], %67 {strides = array<i32>} : memref<1x256x8xbf16, #tpu.memory_space<vmem>>, vector<1x256x8xbf16>,
    return
  }
  func.func @transform_0(%arg0: i32) -> (i32, i32, i32, i32) {
    %c0_i32 = arith.constant 0 : i32
    %c0_i32_0 = arith.constant 0 : i32
    %c0_i32_1 = arith.constant 0 : i32
    %c0_i32_2 = arith.constant 0 : i32
    return %arg0, %c0_i32, %c0_i32_0, %c0_i32_1 : i32, i32, i32, i32
  }
  func.func @transform_1(%arg0: i32) -> (i32, i32, i32) {
    %c0_i32 = arith.constant 0 : i32
    %c0_i32_0 = arith.constant 0 : i32
    %c0_i32_1 = arith.constant 0 : i32
    %c0_i32_2 = arith.constant 0 : i32
    return %c0_i32, %c0_i32_0, %c0_i32_1 : i32, i32, i32
  }
  func.func @transform_2(%arg0: i32) -> (i32, i32) {
    %c0_i32 = arith.constant 0 : i32
    %c0_i32_0 = arith.constant 0 : i32
    %c0_i32_1 = arith.constant 0 : i32
    return %c0_i32, %c0_i32_0 : i32, i32
  }
  func.func @transform_3(%arg0: i32) -> (i32, i32, i32) {
    %c0_i32 = arith.constant 0 : i32
    %c0_i32_0 = arith.constant 0 : i32
    %c0_i32_1 = arith.constant 0 : i32
    return %arg0, %c0_i32, %c0_i32_0 : i32, i32, i32
  }
}

</mosaic_0001>

<llo_original>
// kernel: tpu_custom_call.1
$region0: #{tpu_custom_call.1}
  #allocation0 [shape = 'u32[]', space=smem, size = 0x4, offset = 0x4, fixed_abs, tag = 'smem constant byte address 0x4 - core index']
  #allocation1 [shape = 'u32[72,128]{1,0:T(1,128)}', space=vmem, size = 0x9000, scoped, tag = 'internal scratch']
  %s0 = inlined_call_operand.vmem [shape: bf16[2,68,17,8], index: 0, kind: input, shape index: {}]
  %s1 = inlined_call_operand.vmem [shape: bf16[9,8,8], index: 1, kind: input, shape index: {}]
  %s2 = inlined_call_operand.vmem [shape: f32[1,8], index: 2, kind: input, shape index: {}]
  %s3 = inlined_call_operand.vmem [shape: bf16[2,256,8], index: 3, kind: output, shape index: {}]
  %s4 = sld [smem:[#allocation0]]
  $region45: #{tpu_custom_call.1} parent=0
    _
  %s6 = ssub.s32 1, %s4
  %s7 = scalar_select 0, %s6, %s4
  loop: start=0, step=1, limit=4
  $region2: #{tpu_custom_call.1} parent=0 // loop_pre_header
    _
  $region3: #{tpu_custom_call.1} parent=0 // loop_header
    %s9 = sphi 0, %s13
    %p10 = scmp.ge.s32.totalorder %s9, 4
    %s19 = sphi 0, %s21
    %s22 = sphi 0, %s19
    %s23 = sphi 0, %s22
    %s39 = sphi 0, %s23
    %s43 = sphi 0, %s43
    %s45 = sphi 0, %s43
    %s46 = sphi 0, %s45
    %s60 = sphi 0, %s46
    %s64 = sphi 0, %s64
    %s66 = sphi 0, %s64
    %s67 = sphi 0, %s66
    %s81 = sphi 0, %s67
    %s87 = sphi 0, %s89
    %s90 = sphi 0, %s87
    %s91 = sphi 0, %s90
    %s107 = sphi 0, %s91
  $region4: #{tpu_custom_call.1} parent=0 // loop_header_branch
    %12 = sbr.rel (%p10) target = $region8
  $region5: #{tpu_custom_call.1} parent=0 // loop_body
    %s14 = ssub.s32 %s9, 1
    %s15 = ssub.s32 %s9, 2
    %s16 = sadd.s32 %s9, 1
    %s17 = ssub.s32 %s9, %s16
    %p18 = scmp.eq.s32.totalorder %s17, 0
    %s20 = sadd.s32 %s19, 1
    %s21 = scalar_select %p18, %s19, %s20
    %p24 = pneg %p18
    %p25 = scmp.eq.s32.totalorder %s9, 1
    %p26 = por %p24, %p25
    %p27 = scmp.ne.s32.totalorder %s19, %s22
    %p28 = scmp.eq.s32.totalorder %s9, 0
    %p29 = por %p27, %p28
    %p30 = scmp.ne.s32.totalorder %s19, %s22
    %p31 = scmp.eq.s32.totalorder %s14, 1
    %p32 = por %p30, %p31
    %p33 = scmp.ne.s32.totalorder %s22, %s23
    %p34 = scmp.eq.s32.totalorder %s14, 0
    %p35 = por %p33, %p34
    %p36 = scmp.ne.s32.totalorder %s22, %s23
    %p37 = scmp.eq.s32.totalorder %s15, 1
    %p38 = por %p36, %p37
    %p40 = scmp.ne.s32.totalorder %s23, %s39
    %p41 = scmp.eq.s32.totalorder %s15, 0
    %p42 = por %p40, %p41
    %s44 = sadd.s32 %s43, 1
    %p47 = scmp.eq.s32.totalorder %s9, 1
    %p48 = scmp.ne.s32.totalorder %s43, %s45
    %p49 = scmp.eq.s32.totalorder %s9, 0
    %p50 = por %p48, %p49
    %p51 = scmp.ne.s32.totalorder %s43, %s45
    %p52 = scmp.eq.s32.totalorder %s14, 1
    %p53 = por %p51, %p52
    %p54 = scmp.ne.s32.totalorder %s45, %s46
    %p55 = scmp.eq.s32.totalorder %s14, 0
    %p56 = por %p54, %p55
    %p57 = scmp.ne.s32.totalorder %s45, %s46
    %p58 = scmp.eq.s32.totalorder %s15, 1
    %p59 = por %p57, %p58
    %p61 = scmp.ne.s32.totalorder %s46, %s60
    %p62 = scmp.eq.s32.totalorder %s15, 0
    %p63 = por %p61, %p62
    %s65 = sadd.s32 %s64, 1
    %p68 = scmp.eq.s32.totalorder %s9, 1
    %p69 = scmp.ne.s32.totalorder %s64, %s66
    %p70 = scmp.eq.s32.totalorder %s9, 0
    %p71 = por %p69, %p70
    %p72 = scmp.ne.s32.totalorder %s64, %s66
    %p73 = scmp.eq.s32.totalorder %s14, 1
    %p74 = por %p72, %p73
    %p75 = scmp.ne.s32.totalorder %s66, %s67
    %p76 = scmp.eq.s32.totalorder %s14, 0
    %p77 = por %p75, %p76
    %p78 = scmp.ne.s32.totalorder %s66, %s67
    %p79 = scmp.eq.s32.totalorder %s15, 1
    %p80 = por %p78, %p79
    %p82 = scmp.ne.s32.totalorder %s67, %s81
    %p83 = scmp.eq.s32.totalorder %s15, 0
    %p84 = por %p82, %p83
    %s85 = ssub.s32 %s9, %s16
    %p86 = scmp.eq.s32.totalorder %s85, 0
    %s88 = sadd.s32 %s87, 1
    %s89 = scalar_select %p86, %s87, %s88
    %p92 = pneg %p86
    %p93 = scmp.eq.s32.totalorder %s9, 1
    %p94 = por %p92, %p93
    %p95 = scmp.ne.s32.totalorder %s87, %s90
    %p96 = scmp.eq.s32.totalorder %s9, 0
    %p97 = por %p95, %p96
    %p98 = scmp.ne.s32.totalorder %s87, %s90
    %p99 = scmp.eq.s32.totalorder %s14, 1
    %p100 = por %p98, %p99
    %p101 = scmp.ne.s32.totalorder %s90, %s91
    %p102 = scmp.eq.s32.totalorder %s14, 0
    %p103 = por %p101, %p102
    %p104 = scmp.ne.s32.totalorder %s90, %s91
    %p105 = scmp.eq.s32.totalorder %s15, 1
    %p106 = por %p104, %p105
    %p108 = scmp.ne.s32.totalorder %s91, %s107
    %p109 = scmp.eq.s32.totalorder %s15, 0
    %p110 = por %p108, %p109
    %p111 = scmp.le.s32.totalorder 1, %s9
    %p112 = scmp.lt.s32.totalorder %s9, 3
    %p113 = pnand %p111, %p112
    %p114 = pneg %p113
    // Predicated region
    $region9: #{tpu_custom_call.1} parent=5 // pred_check
      _
    $region10: #{tpu_custom_call.1} parent=5 // pred_check_branch
      %116 = sbr.rel (%p113) target = $region12
    $region11: #{tpu_custom_call.1} parent=5 // pred_region
      %s117 = ssub.s32 %s9, 1
      // Predicated region
      $region13: #{tpu_custom_call.1} parent=11 // pred_check
        %p118 = pneg %p56
      $region14: #{tpu_custom_call.1} parent=11 // pred_check_branch
        %120 = sbr.rel (%p118) target = $region16
      $region15: #{tpu_custom_call.1} parent=11 // pred_region
        _
      $region16: #{tpu_custom_call.1} parent=11 // pred_fallthru
        _
      // Predicated region
      $region17: #{tpu_custom_call.1} parent=11 // pred_check
        %p121 = pneg %p77
      $region18: #{tpu_custom_call.1} parent=11 // pred_check_branch
        %123 = sbr.rel (%p121) target = $region20
      $region19: #{tpu_custom_call.1} parent=11 // pred_region
        _
      $region20: #{tpu_custom_call.1} parent=11 // pred_fallthru
        _
    $region12: #{tpu_custom_call.1} parent=5 // pred_fallthru
      _
    %p124 = scmp.lt.s32.totalorder %s9, 2
    // Predicated region
    $region21: #{tpu_custom_call.1} parent=5 // pred_check
      %p125 = pneg %p124
    $region22: #{tpu_custom_call.1} parent=5 // pred_check_branch
      %127 = sbr.rel (%p125) target = $region24
    $region23: #{tpu_custom_call.1} parent=5 // pred_region
      // Predicated region
      $region25: #{tpu_custom_call.1} parent=23 // pred_check
        %p128 = pneg %p29
      $region26: #{tpu_custom_call.1} parent=23 // pred_check_branch
        %130 = sbr.rel (%p128) target = $region28
      $region27: #{tpu_custom_call.1} parent=23 // pred_region
        %p131 = scmp.lt.s32.totalorder %s9, 1
        %s132 = scalar_select %p131, %s9, 1
        %s133 = smul.addr %s132, 204
        %s134 = smul.addr %s133, 4
        %s135 = scalar_lea.vmem %s0, %s134
      $region28: #{tpu_custom_call.1} parent=23 // pred_fallthru
        _
    $region24: #{tpu_custom_call.1} parent=5 // pred_fallthru
      _
    %p136 = scmp.le.s32.totalorder 1, %s9
    %p137 = scmp.lt.s32.totalorder %s9, 3
    %p138 = pnand %p136, %p137
    %p139 = pneg %p138
    // Predicated region
    $region29: #{tpu_custom_call.1} parent=5 // pred_check
      _
    $region30: #{tpu_custom_call.1} parent=5 // pred_check_branch
      %141 = sbr.rel (%p138) target = $region32
    $region31: #{tpu_custom_call.1} parent=5 // pred_region
      %s142 = ssub.s32 %s9, 1
      %p143 = scmp.lt.s32.totalorder %s14, 1
      %s144 = scalar_select %p143, %s14, 1
      %s145 = smul.addr %s144, 204
      %s146 = smul.addr %s145, 4
      %s147 = scalar_lea.vmem %s0, %s146
      %p148 = pneg %p35
      %p149 = pneg %p32
      %p150 = pneg %p56
      %p151 = pneg %p53
      %p152 = pneg %p77
      %p153 = pneg %p74
      %p154 = pneg %p103
      %p155 = pneg %p100
      %p156 = scmp.lt.s32.totalorder %s14, 1
      %s157 = scalar_select %p156, %s14, 1
      %s158 = smul.addr %s157, 32
      %s159 = smul.addr %s158, 4
      %s160 = scalar_lea.vmem %s3, %s159
      %p161 = scmp.lt.s32.totalorder %s14, 1
      %s162 = scalar_select %p161, %s14, 1
      %s163 = smul.addr %s162, 204
      %s164 = smul.addr %s163, 4
      %s165 = scalar_lea.vmem %s0, %s164
      %p166 = scmp.lt.s32.totalorder %s14, 1
      %s167 = scalar_select %p166, %s14, 1
      %s168 = smul.addr %s167, 32
      %s169 = smul.addr %s168, 4
      %s170 = scalar_lea.vmem %s3, %s169
      %v172 = vld [vmem:[%s165] sm:$0xf]
      %v173 = vld [vmem:[%s165 + $0x4] sm:$0xf]
      %v174 = vld [vmem:[%s165 + $0x8] sm:$0x1]
      %v175 = vld [vmem:[%s165 + $0xc] sm:$0xf]
      %v176 = vld [vmem:[%s165 + $0x10] sm:$0xf]
      %v177 = vld [vmem:[%s165 + $0x14] sm:$0x1]
      %v178 = vld [vmem:[%s165 + $0x18] sm:$0xf]
      %v179 = vld [vmem:[%s165 + $0x1c] sm:$0xf]
      %v180 = vld [vmem:[%s165 + $0x20] sm:$0x1]
      %v181 = vld [vmem:[%s165 + $0x24] sm:$0xf]
      %v182 = vld [vmem:[%s165 + $0x28] sm:$0xf]
      %v183 = vld [vmem:[%s165 + $0x2c] sm:$0x1]
      %v184 = vld [vmem:[%s165 + $0x30] sm:$0xf]
      %v185 = vld [vmem:[%s165 + $0x34] sm:$0xf]
      %v186 = vld [vmem:[%s165 + $0x38] sm:$0x1]
      %v187 = vld [vmem:[%s165 + $0x3c] sm:$0xf]
      %v188 = vld [vmem:[%s165 + $0x40] sm:$0xf]
      %v189 = vld [vmem:[%s165 + $0x44] sm:$0x1]
      %v190 = vld [vmem:[%s165 + $0x48] sm:$0xf]
      %v191 = vld [vmem:[%s165 + $0x4c] sm:$0xf]
      %v192 = vld [vmem:[%s165 + $0x50] sm:$0x1]
      %v193 = vld [vmem:[%s165 + $0x54] sm:$0xf]
      %v194 = vld [vmem:[%s165 + $0x58] sm:$0xf]
      %v195 = vld [vmem:[%s165 + $0x5c] sm:$0x1]
      %v196 = vld [vmem:[%s165 + $0x60] sm:$0xf]
      %v197 = vld [vmem:[%s165 + $0x64] sm:$0xf]
      %v198 = vld [vmem:[%s165 + $0x68] sm:$0x1]
      %v199 = vld [vmem:[%s165 + $0x6c] sm:$0xf]
      %v200 = vld [vmem:[%s165 + $0x70] sm:$0xf]
      %v201 = vld [vmem:[%s165 + $0x74] sm:$0x1]
      %v202 = vld [vmem:[%s165 + $0x78] sm:$0xf]
      %v203 = vld [vmem:[%s165 + $0x7c] sm:$0xf]
      %v204 = vld [vmem:[%s165 + $0x80] sm:$0x1]
      %v205 = vld [vmem:[%s165 + $0x84] sm:$0xf]
      %v206 = vld [vmem:[%s165 + $0x88] sm:$0xf]
      %v207 = vld [vmem:[%s165 + $0x8c] sm:$0x1]
      %v208 = vld [vmem:[%s165 + $0x90] sm:$0xf]
      %v209 = vld [vmem:[%s165 + $0x94] sm:$0xf]
      %v210 = vld [vmem:[%s165 + $0x98] sm:$0x1]
      %v211 = vld [vmem:[%s165 + $0x9c] sm:$0xf]
      %v212 = vld [vmem:[%s165 + $0xa0] sm:$0xf]
      %v213 = vld [vmem:[%s165 + $0xa4] sm:$0x1]
      %v214 = vld [vmem:[%s165 + $0xa8] sm:$0xf]
      %v215 = vld [vmem:[%s165 + $0xac] sm:$0xf]
      %v216 = vld [vmem:[%s165 + $0xb0] sm:$0x1]
      %v217 = vld [vmem:[%s165 + $0xb4] sm:$0xf]
      %v218 = vld [vmem:[%s165 + $0xb8] sm:$0xf]
      %v219 = vld [vmem:[%s165 + $0xbc] sm:$0x1]
      %v220 = vld [vmem:[%s165 + $0xc0] sm:$0xf]
      %v221 = vld [vmem:[%s165 + $0xc4] sm:$0xf]
      %v222 = vld [vmem:[%s165 + $0xc8] sm:$0x1]
      %v223 = vld [vmem:[%s165 + $0xcc] sm:$0xf]
      %v224 = vld [vmem:[%s165 + $0xd0] sm:$0xf]
      %v225 = vld [vmem:[%s165 + $0xd8] sm:$0xf]
      %v226 = vld [vmem:[%s165 + $0xdc] sm:$0xf]
      %v227 = vld [vmem:[%s165 + $0xe4] sm:$0xf]
      %v228 = vld [vmem:[%s165 + $0xe8] sm:$0xf]
      %v229 = vld [vmem:[%s165 + $0xf0] sm:$0xf]
      %v230 = vld [vmem:[%s165 + $0xf4] sm:$0xf]
      %v231 = vld [vmem:[%s165 + $0xfc] sm:$0xf]
      %v232 = vld [vmem:[%s165 + $0x100] sm:$0xf]
      %v233 = vld [vmem:[%s165 + $0x108] sm:$0xf]
      %v234 = vld [vmem:[%s165 + $0x10c] sm:$0xf]
      %v235 = vld [vmem:[%s165 + $0x114] sm:$0xf]
      %v236 = vld [vmem:[%s165 + $0x118] sm:$0xf]
      %v237 = vld [vmem:[%s165 + $0x120] sm:$0xf]
      %v238 = vld [vmem:[%s165 + $0x124] sm:$0xf]
      %v239 = vld [vmem:[%s165 + $0x12c] sm:$0xf]
      %v240 = vld [vmem:[%s165 + $0x130] sm:$0xf]
      %v241 = vld [vmem:[%s165 + $0x138] sm:$0xf]
      %v242 = vld [vmem:[%s165 + $0x13c] sm:$0xf]
      %v243 = vld [vmem:[%s165 + $0x144] sm:$0xf]
      %v244 = vld [vmem:[%s165 + $0x148] sm:$0xf]
      %v245 = vld [vmem:[%s165 + $0x150] sm:$0xf]
      %v246 = vld [vmem:[%s165 + $0x154] sm:$0xf]
      %v247 = vld [vmem:[%s165 + $0x15c] sm:$0xf]
      %v248 = vld [vmem:[%s165 + $0x160] sm:$0xf]
      %v249 = vld [vmem:[%s165 + $0x168] sm:$0xf]
      %v250 = vld [vmem:[%s165 + $0x16c] sm:$0xf]
      %v251 = vld [vmem:[%s165 + $0x174] sm:$0xf]
      %v252 = vld [vmem:[%s165 + $0x178] sm:$0xf]
      %v253 = vld [vmem:[%s165 + $0x180] sm:$0xf]
      %v254 = vld [vmem:[%s165 + $0x184] sm:$0xf]
      %v255 = vld [vmem:[%s165 + $0x18c] sm:$0xf]
      %v256 = vld [vmem:[%s165 + $0x190] sm:$0xf]
      %v257 = vld [vmem:[%s165 + $0x198] sm:$0xf]
      %v258 = vld [vmem:[%s165 + $0x19c] sm:$0xf]
      %v259 = vld [vmem:[%s165 + $0x1a0] sm:$0x1]
      %v260 = vld [vmem:[%s165 + $0x1a4] sm:$0xf]
      %v261 = vld [vmem:[%s165 + $0x1a8] sm:$0xf]
      %v262 = vld [vmem:[%s165 + $0x1ac] sm:$0x1]
      %v263 = vld [vmem:[%s165 + $0x1b0] sm:$0xf]
      %v264 = vld [vmem:[%s165 + $0x1b4] sm:$0xf]
      %v265 = vld [vmem:[%s165 + $0x1b8] sm:$0x1]
      %v266 = vld [vmem:[%s165 + $0x1bc] sm:$0xf]
      %v267 = vld [vmem:[%s165 + $0x1c0] sm:$0xf]
      %v268 = vld [vmem:[%s165 + $0x1c4] sm:$0x1]
      %v269 = vld [vmem:[%s165 + $0x1c8] sm:$0xf]
      %v270 = vld [vmem:[%s165 + $0x1cc] sm:$0xf]
      %v271 = vld [vmem:[%s165 + $0x1d0] sm:$0x1]
      %v272 = vld [vmem:[%s165 + $0x1d4] sm:$0xf]
      %v273 = vld [vmem:[%s165 + $0x1d8] sm:$0xf]
      %v274 = vld [vmem:[%s165 + $0x1dc] sm:$0x1]
      %v275 = vld [vmem:[%s165 + $0x1e0] sm:$0xf]
      %v276 = vld [vmem:[%s165 + $0x1e4] sm:$0xf]
      %v277 = vld [vmem:[%s165 + $0x1e8] sm:$0x1]
      %v278 = vld [vmem:[%s165 + $0x1ec] sm:$0xf]
      %v279 = vld [vmem:[%s165 + $0x1f0] sm:$0xf]
      %v280 = vld [vmem:[%s165 + $0x1f4] sm:$0x1]
      %v281 = vld [vmem:[%s165 + $0x1f8] sm:$0xf]
      %v282 = vld [vmem:[%s165 + $0x1fc] sm:$0xf]
      %v283 = vld [vmem:[%s165 + $0x200] sm:$0x1]
      %v284 = vld [vmem:[%s165 + $0x204] sm:$0xf]
      %v285 = vld [vmem:[%s165 + $0x208] sm:$0xf]
      %v286 = vld [vmem:[%s165 + $0x20c] sm:$0x1]
      %v287 = vld [vmem:[%s165 + $0x210] sm:$0xf]
      %v288 = vld [vmem:[%s165 + $0x214] sm:$0xf]
      %v289 = vld [vmem:[%s165 + $0x218] sm:$0x1]
      %v290 = vld [vmem:[%s165 + $0x21c] sm:$0xf]
      %v291 = vld [vmem:[%s165 + $0x220] sm:$0xf]
      %v292 = vld [vmem:[%s165 + $0x224] sm:$0x1]
      %v293 = vld [vmem:[%s165 + $0x228] sm:$0xf]
      %v294 = vld [vmem:[%s165 + $0x22c] sm:$0xf]
      %v295 = vld [vmem:[%s165 + $0x230] sm:$0x1]
      %v296 = vld [vmem:[%s165 + $0x234] sm:$0xf]
      %v297 = vld [vmem:[%s165 + $0x238] sm:$0xf]
      %v298 = vld [vmem:[%s165 + $0x23c] sm:$0x1]
      %v299 = vld [vmem:[%s165 + $0x240] sm:$0xf]
      %v300 = vld [vmem:[%s165 + $0x244] sm:$0xf]
      %v301 = vld [vmem:[%s165 + $0x248] sm:$0x1]
      %v302 = vld [vmem:[%s165 + $0x24c] sm:$0xf]
      %v303 = vld [vmem:[%s165 + $0x250] sm:$0xf]
      %v304 = vld [vmem:[%s165 + $0x254] sm:$0x1]
      %v305 = vld [vmem:[%s165 + $0x264] sm:$0xf]
      %v306 = vld [vmem:[%s165 + $0x268] sm:$0xf]
      %v307 = vld [vmem:[%s165 + $0x270] sm:$0xf]
      %v308 = vld [vmem:[%s165 + $0x274] sm:$0xf]
      %v309 = vld [vmem:[%s165 + $0x27c] sm:$0xf]
      %v310 = vld [vmem:[%s165 + $0x280] sm:$0xf]
      %v311 = vld [vmem:[%s165 + $0x288] sm:$0xf]
      %v312 = vld [vmem:[%s165 + $0x28c] sm:$0xf]
      %v313 = vld [vmem:[%s165 + $0x294] sm:$0xf]
      %v314 = vld [vmem:[%s165 + $0x298] sm:$0xf]
      %v315 = vld [vmem:[%s165 + $0x2a0] sm:$0xf]
      %v316 = vld [vmem:[%s165 + $0x2a4] sm:$0xf]
      %v317 = vld [vmem:[%s165 + $0x2ac] sm:$0xf]
      %v318 = vld [vmem:[%s165 + $0x2b0] sm:$0xf]
      %v319 = vld [vmem:[%s165 + $0x2b8] sm:$0xf]
      %v320 = vld [vmem:[%s165 + $0x2bc] sm:$0xf]
      %v321 = vld [vmem:[%s165 + $0x2c4] sm:$0xf]
      %v322 = vld [vmem:[%s165 + $0x2c8] sm:$0xf]
      %v323 = vld [vmem:[%s165 + $0x2d0] sm:$0xf]
      %v324 = vld [vmem:[%s165 + $0x2d4] sm:$0xf]
      %v325 = vld [vmem:[%s165 + $0x2dc] sm:$0xf]
      %v326 = vld [vmem:[%s165 + $0x2e0] sm:$0xf]
      %v327 = vld [vmem:[%s165 + $0x2e8] sm:$0xf]
      %v328 = vld [vmem:[%s165 + $0x2ec] sm:$0xf]
      %v329 = vld [vmem:[%s165 + $0x2f4] sm:$0xf]
      %v330 = vld [vmem:[%s165 + $0x2f8] sm:$0xf]
      %v331 = vld [vmem:[%s165 + $0x300] sm:$0xf]
      %v332 = vld [vmem:[%s165 + $0x304] sm:$0xf]
      %v333 = vld [vmem:[%s165 + $0x30c] sm:$0xf]
      %v334 = vld [vmem:[%s165 + $0x310] sm:$0xf]
      %v335 = vld [vmem:[%s165 + $0x318] sm:$0xf]
      %v336 = vld [vmem:[%s165 + $0x31c] sm:$0xf]
      %vm337 = vsmask.f32 3328
      %vm338 = vsmask.f32 7440
      %vm339 = vmor %vm337, %vm338
      %v341 = vshrl.u32 %v172, 16
      %v343 = vrot.slane %v341, 4
      %v344 = vshll.u32 %v172, 16
      %v346 = vrot.slane %v344, 5
      %v347 = vor.u32 %v343, %v346
      %v348 = vrot.slane %v347, 4
      %v350 = vshll.u32 %v173, 16
      %v352 = vrot.slane %v350, 5
      %v353 = vsel %vm339, %v348, %v352
      %v354 = vshrl.u32 %v173, 16
      %v356 = vrot.slane %v354, 4
      %v357 = vor.u32 %v356, %v352
      %v358 = vrot.slane %v357, 4
      %v360 = vshll.u32 %v174, 16
      %v362 = vrot.slane %v360, 5
      %v363 = vsel %vm339, %v358, %v362
      %v365 = vshrl.u32 %v175, 16
      %v367 = vrot.slane %v365, 4
      %v368 = vshll.u32 %v175, 16
      %v370 = vrot.slane %v368, 5
      %v371 = vor.u32 %v367, %v370
      %v372 = vrot.slane %v371, 4
      %v374 = vshll.u32 %v176, 16
      %v376 = vrot.slane %v374, 5
      %v377 = vsel %vm339, %v372, %v376
      %v378 = vshrl.u32 %v176, 16
      %v380 = vrot.slane %v378, 4
      %v381 = vor.u32 %v380, %v376
      %v382 = vrot.slane %v381, 4
      %v384 = vshll.u32 %v177, 16
      %v386 = vrot.slane %v384, 5
      %v387 = vsel %vm339, %v382, %v386
      %v389 = vshrl.u32 %v178, 16
      %v391 = vrot.slane %v389, 4
      %v392 = vshll.u32 %v178, 16
      %v394 = vrot.slane %v392, 5
      %v395 = vor.u32 %v391, %v394
      %v396 = vrot.slane %v395, 4
      %v398 = vshll.u32 %v179, 16
      %v400 = vrot.slane %v398, 5
      %v401 = vsel %vm339, %v396, %v400
      %v402 = vshrl.u32 %v179, 16
      %v404 = vrot.slane %v402, 4
      %v405 = vor.u32 %v404, %v400
      %v406 = vrot.slane %v405, 4
      %v408 = vshll.u32 %v180, 16
      %v410 = vrot.slane %v408, 5
      %v411 = vsel %vm339, %v406, %v410
      %v413 = vshrl.u32 %v181, 16
      %v415 = vrot.slane %v413, 4
      %v416 = vshll.u32 %v181, 16
      %v418 = vrot.slane %v416, 5
      %v419 = vor.u32 %v415, %v418
      %v420 = vrot.slane %v419, 4
      %v422 = vshll.u32 %v182, 16
      %v424 = vrot.slane %v422, 5
      %v425 = vsel %vm339, %v420, %v424
      %v426 = vshrl.u32 %v182, 16
      %v428 = vrot.slane %v426, 4
      %v429 = vor.u32 %v428, %v424
      %v430 = vrot.slane %v429, 4
      %v432 = vshll.u32 %v183, 16
      %v434 = vrot.slane %v432, 5
      %v435 = vsel %vm339, %v430, %v434
      %v437 = vshrl.u32 %v184, 16
      %v439 = vrot.slane %v437, 4
      %v440 = vshll.u32 %v184, 16
      %v442 = vrot.slane %v440, 5
      %v443 = vor.u32 %v439, %v442
      %v444 = vrot.slane %v443, 4
      %v446 = vshll.u32 %v185, 16
      %v448 = vrot.slane %v446, 5
      %v449 = vsel %vm339, %v444, %v448
      %v450 = vshrl.u32 %v185, 16
      %v452 = vrot.slane %v450, 4
      %v453 = vor.u32 %v452, %v448
      %v454 = vrot.slane %v453, 4
      %v456 = vshll.u32 %v186, 16
      %v458 = vrot.slane %v456, 5
      %v459 = vsel %vm339, %v454, %v458
      %v461 = vshrl.u32 %v187, 16
      %v463 = vrot.slane %v461, 4
      %v464 = vshll.u32 %v187, 16
      %v466 = vrot.slane %v464, 5
      %v467 = vor.u32 %v463, %v466
      %v468 = vrot.slane %v467, 4
      %v470 = vshll.u32 %v188, 16
      %v472 = vrot.slane %v470, 5
      %v473 = vsel %vm339, %v468, %v472
      %v474 = vshrl.u32 %v188, 16
      %v476 = vrot.slane %v474, 4
      %v477 = vor.u32 %v476, %v472
      %v478 = vrot.slane %v477, 4
      %v480 = vshll.u32 %v189, 16
      %v482 = vrot.slane %v480, 5
      %v483 = vsel %vm339, %v478, %v482
      %v485 = vshrl.u32 %v190, 16
      %v487 = vrot.slane %v485, 4
      %v488 = vshll.u32 %v190, 16
      %v490 = vrot.slane %v488, 5
      %v491 = vor.u32 %v487, %v490
      %v492 = vrot.slane %v491, 4
      %v494 = vshll.u32 %v191, 16
      %v496 = vrot.slane %v494, 5
      %v497 = vsel %vm339, %v492, %v496
      %v498 = vshrl.u32 %v191, 16
      %v500 = vrot.slane %v498, 4
      %v501 = vor.u32 %v500, %v496
      %v502 = vrot.slane %v501, 4
      %v504 = vshll.u32 %v192, 16
      %v506 = vrot.slane %v504, 5
      %v507 = vsel %vm339, %v502, %v506
      %v509 = vshrl.u32 %v193, 16
      %v511 = vrot.slane %v509, 4
      %v512 = vshll.u32 %v193, 16
      %v514 = vrot.slane %v512, 5
      %v515 = vor.u32 %v511, %v514
      %v516 = vrot.slane %v515, 4
      %v518 = vshll.u32 %v194, 16
      %v520 = vrot.slane %v518, 5
      %v521 = vsel %vm339, %v516, %v520
      %v522 = vshrl.u32 %v194, 16
      %v524 = vrot.slane %v522, 4
      %v525 = vor.u32 %v524, %v520
      %v526 = vrot.slane %v525, 4
      %v528 = vshll.u32 %v195, 16
      %v530 = vrot.slane %v528, 5
      %v531 = vsel %vm339, %v526, %v530
      %v533 = vshrl.u32 %v196, 16
      %v535 = vrot.slane %v533, 4
      %v536 = vshll.u32 %v196, 16
      %v538 = vrot.slane %v536, 5
      %v539 = vor.u32 %v535, %v538
      %v540 = vrot.slane %v539, 4
      %v542 = vshll.u32 %v197, 16
      %v544 = vrot.slane %v542, 5
      %v545 = vsel %vm339, %v540, %v544
      %v546 = vshrl.u32 %v197, 16
      %v548 = vrot.slane %v546, 4
      %v549 = vor.u32 %v548, %v544
      %v550 = vrot.slane %v549, 4
      %v552 = vshll.u32 %v198, 16
      %v554 = vrot.slane %v552, 5
      %v555 = vsel %vm339, %v550, %v554
      %v557 = vshrl.u32 %v199, 16
      %v559 = vrot.slane %v557, 4
      %v560 = vshll.u32 %v199, 16
      %v562 = vrot.slane %v560, 5
      %v563 = vor.u32 %v559, %v562
      %v564 = vrot.slane %v563, 4
      %v566 = vshll.u32 %v200, 16
      %v568 = vrot.slane %v566, 5
      %v569 = vsel %vm339, %v564, %v568
      %v570 = vshrl.u32 %v200, 16
      %v572 = vrot.slane %v570, 4
      %v573 = vor.u32 %v572, %v568
      %v574 = vrot.slane %v573, 4
      %v576 = vshll.u32 %v201, 16
      %v578 = vrot.slane %v576, 5
      %v579 = vsel %vm339, %v574, %v578
      %v581 = vshrl.u32 %v202, 16
      %v583 = vrot.slane %v581, 4
      %v584 = vshll.u32 %v202, 16
      %v586 = vrot.slane %v584, 5
      %v587 = vor.u32 %v583, %v586
      %v588 = vrot.slane %v587, 4
      %v590 = vshll.u32 %v203, 16
      %v592 = vrot.slane %v590, 5
      %v593 = vsel %vm339, %v588, %v592
      %v594 = vshrl.u32 %v203, 16
      %v596 = vrot.slane %v594, 4
      %v597 = vor.u32 %v596, %v592
      %v598 = vrot.slane %v597, 4
      %v600 = vshll.u32 %v204, 16
      %v602 = vrot.slane %v600, 5
      %v603 = vsel %vm339, %v598, %v602
      %v605 = vshrl.u32 %v205, 16
      %v607 = vrot.slane %v605, 4
      %v608 = vshll.u32 %v205, 16
      %v610 = vrot.slane %v608, 5
      %v611 = vor.u32 %v607, %v610
      %v612 = vrot.slane %v611, 4
      %v614 = vshll.u32 %v206, 16
      %v616 = vrot.slane %v614, 5
      %v617 = vsel %vm339, %v612, %v616
      %v618 = vshrl.u32 %v206, 16
      %v620 = vrot.slane %v618, 4
      %v621 = vor.u32 %v620, %v616
      %v622 = vrot.slane %v621, 4
      %v624 = vshll.u32 %v207, 16
      %v626 = vrot.slane %v624, 5
      %v627 = vsel %vm339, %v622, %v626
      %v629 = vshrl.u32 %v208, 16
      %v631 = vrot.slane %v629, 4
      %v632 = vshll.u32 %v208, 16
      %v634 = vrot.slane %v632, 5
      %v635 = vor.u32 %v631, %v634
      %v636 = vrot.slane %v635, 4
      %v638 = vshll.u32 %v209, 16
      %v640 = vrot.slane %v638, 5
      %v641 = vsel %vm339, %v636, %v640
      %v642 = vshrl.u32 %v209, 16
      %v644 = vrot.slane %v642, 4
      %v645 = vor.u32 %v644, %v640
      %v646 = vrot.slane %v645, 4
      %v648 = vshll.u32 %v210, 16
      %v650 = vrot.slane %v648, 5
      %v651 = vsel %vm339, %v646, %v650
      %v653 = vshrl.u32 %v211, 16
      %v655 = vrot.slane %v653, 4
      %v656 = vshll.u32 %v211, 16
      %v658 = vrot.slane %v656, 5
      %v659 = vor.u32 %v655, %v658
      %v660 = vrot.slane %v659, 4
      %v662 = vshll.u32 %v212, 16
      %v664 = vrot.slane %v662, 5
      %v665 = vsel %vm339, %v660, %v664
      %v666 = vshrl.u32 %v212, 16
      %v668 = vrot.slane %v666, 4
      %v669 = vor.u32 %v668, %v664
      %v670 = vrot.slane %v669, 4
      %v672 = vshll.u32 %v213, 16
      %v674 = vrot.slane %v672, 5
      %v675 = vsel %vm339, %v670, %v674
      %v677 = vshrl.u32 %v214, 16
      %v679 = vrot.slane %v677, 4
      %v680 = vshll.u32 %v214, 16
      %v682 = vrot.slane %v680, 5
      %v683 = vor.u32 %v679, %v682
      %v684 = vrot.slane %v683, 4
      %v686 = vshll.u32 %v215, 16
      %v688 = vrot.slane %v686, 5
      %v689 = vsel %vm339, %v684, %v688
      %v690 = vshrl.u32 %v215, 16
      %v692 = vrot.slane %v690, 4
      %v693 = vor.u32 %v692, %v688
      %v694 = vrot.slane %v693, 4
      %v696 = vshll.u32 %v216, 16
      %v698 = vrot.slane %v696, 5
      %v699 = vsel %vm339, %v694, %v698
      %v701 = vshrl.u32 %v217, 16
      %v703 = vrot.slane %v701, 4
      %v704 = vshll.u32 %v217, 16
      %v706 = vrot.slane %v704, 5
      %v707 = vor.u32 %v703, %v706
      %v708 = vrot.slane %v707, 4
      %v710 = vshll.u32 %v218, 16
      %v712 = vrot.slane %v710, 5
      %v713 = vsel %vm339, %v708, %v712
      %v714 = vshrl.u32 %v218, 16
      %v716 = vrot.slane %v714, 4
      %v717 = vor.u32 %v716, %v712
      %v718 = vrot.slane %v717, 4
      %v720 = vshll.u32 %v219, 16
      %v722 = vrot.slane %v720, 5
      %v723 = vsel %vm339, %v718, %v722
      %v725 = vshrl.u32 %v257, 16
      %v727 = vrot.slane %v725, 4
      %v728 = vshll.u32 %v257, 16
      %v730 = vrot.slane %v728, 5
      %v731 = vor.u32 %v727, %v730
      %v732 = vrot.slane %v731, 4
      %v734 = vshll.u32 %v258, 16
      %v736 = vrot.slane %v734, 5
      %v737 = vsel %vm339, %v732, %v736
      %v738 = vshrl.u32 %v258, 16
      %v740 = vrot.slane %v738, 4
      %v741 = vor.u32 %v740, %v736
      %v742 = vrot.slane %v741, 4
      %v744 = vshll.u32 %v259, 16
      %v746 = vrot.slane %v744, 5
      %v747 = vsel %vm339, %v742, %v746
      %v749 = vshrl.u32 %v260, 16
      %v751 = vrot.slane %v749, 4
      %v752 = vshll.u32 %v260, 16
      %v754 = vrot.slane %v752, 5
      %v755 = vor.u32 %v751, %v754
      %v756 = vrot.slane %v755, 4
      %v758 = vshll.u32 %v261, 16
      %v760 = vrot.slane %v758, 5
      %v761 = vsel %vm339, %v756, %v760
      %v762 = vshrl.u32 %v261, 16
      %v764 = vrot.slane %v762, 4
      %v765 = vor.u32 %v764, %v760
      %v766 = vrot.slane %v765, 4
      %v768 = vshll.u32 %v262, 16
      %v770 = vrot.slane %v768, 5
      %v771 = vsel %vm339, %v766, %v770
      %v773 = vshrl.u32 %v263, 16
      %v775 = vrot.slane %v773, 4
      %v776 = vshll.u32 %v263, 16
      %v778 = vrot.slane %v776, 5
      %v779 = vor.u32 %v775, %v778
      %v780 = vrot.slane %v779, 4
      %v782 = vshll.u32 %v264, 16
      %v784 = vrot.slane %v782, 5
      %v785 = vsel %vm339, %v780, %v784
      %v786 = vshrl.u32 %v264, 16
      %v788 = vrot.slane %v786, 4
      %v789 = vor.u32 %v788, %v784
      %v790 = vrot.slane %v789, 4
      %v792 = vshll.u32 %v265, 16
      %v794 = vrot.slane %v792, 5
      %v795 = vsel %vm339, %v790, %v794
      %v797 = vshrl.u32 %v266, 16
      %v799 = vrot.slane %v797, 4
      %v800 = vshll.u32 %v266, 16
      %v802 = vrot.slane %v800, 5
      %v803 = vor.u32 %v799, %v802
      %v804 = vrot.slane %v803, 4
      %v806 = vshll.u32 %v267, 16
      %v808 = vrot.slane %v806, 5
      %v809 = vsel %vm339, %v804, %v808
      %v810 = vshrl.u32 %v267, 16
      %v812 = vrot.slane %v810, 4
      %v813 = vor.u32 %v812, %v808
      %v814 = vrot.slane %v813, 4
      %v816 = vshll.u32 %v268, 16
      %v818 = vrot.slane %v816, 5
      %v819 = vsel %vm339, %v814, %v818
      %v821 = vshrl.u32 %v269, 16
      %v823 = vrot.slane %v821, 4
      %v824 = vshll.u32 %v269, 16
      %v826 = vrot.slane %v824, 5
      %v827 = vor.u32 %v823, %v826
      %v828 = vrot.slane %v827, 4
      %v830 = vshll.u32 %v270, 16
      %v832 = vrot.slane %v830, 5
      %v833 = vsel %vm339, %v828, %v832
      %v834 = vshrl.u32 %v270, 16
      %v836 = vrot.slane %v834, 4
      %v837 = vor.u32 %v836, %v832
      %v838 = vrot.slane %v837, 4
      %v840 = vshll.u32 %v271, 16
      %v842 = vrot.slane %v840, 5
      %v843 = vsel %vm339, %v838, %v842
      %v845 = vshrl.u32 %v272, 16
      %v847 = vrot.slane %v845, 4
      %v848 = vshll.u32 %v272, 16
      %v850 = vrot.slane %v848, 5
      %v851 = vor.u32 %v847, %v850
      %v852 = vrot.slane %v851, 4
      %v854 = vshll.u32 %v273, 16
      %v856 = vrot.slane %v854, 5
      %v857 = vsel %vm339, %v852, %v856
      %v858 = vshrl.u32 %v273, 16
      %v860 = vrot.slane %v858, 4
      %v861 = vor.u32 %v860, %v856
      %v862 = vrot.slane %v861, 4
      %v864 = vshll.u32 %v274, 16
      %v866 = vrot.slane %v864, 5
      %v867 = vsel %vm339, %v862, %v866
      %v869 = vshrl.u32 %v275, 16
      %v871 = vrot.slane %v869, 4
      %v872 = vshll.u32 %v275, 16
      %v874 = vrot.slane %v872, 5
      %v875 = vor.u32 %v871, %v874
      %v876 = vrot.slane %v875, 4
      %v878 = vshll.u32 %v276, 16
      %v880 = vrot.slane %v878, 5
      %v881 = vsel %vm339, %v876, %v880
      %v882 = vshrl.u32 %v276, 16
      %v884 = vrot.slane %v882, 4
      %v885 = vor.u32 %v884, %v880
      %v886 = vrot.slane %v885, 4
      %v888 = vshll.u32 %v277, 16
      %v890 = vrot.slane %v888, 5
      %v891 = vsel %vm339, %v886, %v890
      %v893 = vshrl.u32 %v278, 16
      %v895 = vrot.slane %v893, 4
      %v896 = vshll.u32 %v278, 16
      %v898 = vrot.slane %v896, 5
      %v899 = vor.u32 %v895, %v898
      %v900 = vrot.slane %v899, 4
      %v902 = vshll.u32 %v279, 16
      %v904 = vrot.slane %v902, 5
      %v905 = vsel %vm339, %v900, %v904
      %v906 = vshrl.u32 %v279, 16
      %v908 = vrot.slane %v906, 4
      %v909 = vor.u32 %v908, %v904
      %v910 = vrot.slane %v909, 4
      %v912 = vshll.u32 %v280, 16
      %v914 = vrot.slane %v912, 5
      %v915 = vsel %vm339, %v910, %v914
      %v917 = vshrl.u32 %v281, 16
      %v919 = vrot.slane %v917, 4
      %v920 = vshll.u32 %v281, 16
      %v922 = vrot.slane %v920, 5
      %v923 = vor.u32 %v919, %v922
      %v924 = vrot.slane %v923, 4
      %v926 = vshll.u32 %v282, 16
      %v928 = vrot.slane %v926, 5
      %v929 = vsel %vm339, %v924, %v928
      %v930 = vshrl.u32 %v282, 16
      %v932 = vrot.slane %v930, 4
      %v933 = vor.u32 %v932, %v928
      %v934 = vrot.slane %v933, 4
      %v936 = vshll.u32 %v283, 16
      %v938 = vrot.slane %v936, 5
      %v939 = vsel %vm339, %v934, %v938
      %v941 = vshrl.u32 %v284, 16
      %v943 = vrot.slane %v941, 4
      %v944 = vshll.u32 %v284, 16
      %v946 = vrot.slane %v944, 5
      %v947 = vor.u32 %v943, %v946
      %v948 = vrot.slane %v947, 4
      %v950 = vshll.u32 %v285, 16
      %v952 = vrot.slane %v950, 5
      %v953 = vsel %vm339, %v948, %v952
      %v954 = vshrl.u32 %v285, 16
      %v956 = vrot.slane %v954, 4
      %v957 = vor.u32 %v956, %v952
      %v958 = vrot.slane %v957, 4
      %v960 = vshll.u32 %v286, 16
      %v962 = vrot.slane %v960, 5
      %v963 = vsel %vm339, %v958, %v962
      %v965 = vshrl.u32 %v287, 16
      %v967 = vrot.slane %v965, 4
      %v968 = vshll.u32 %v287, 16
      %v970 = vrot.slane %v968, 5
      %v971 = vor.u32 %v967, %v970
      %v972 = vrot.slane %v971, 4
      %v974 = vshll.u32 %v288, 16
      %v976 = vrot.slane %v974, 5
      %v977 = vsel %vm339, %v972, %v976
      %v978 = vshrl.u32 %v288, 16
      %v980 = vrot.slane %v978, 4
      %v981 = vor.u32 %v980, %v976
      %v982 = vrot.slane %v981, 4
      %v984 = vshll.u32 %v289, 16
      %v986 = vrot.slane %v984, 5
      %v987 = vsel %vm339, %v982, %v986
      %v989 = vshrl.u32 %v290, 16
      %v991 = vrot.slane %v989, 4
      %v992 = vshll.u32 %v290, 16
      %v994 = vrot.slane %v992, 5
      %v995 = vor.u32 %v991, %v994
      %v996 = vrot.slane %v995, 4
      %v998 = vshll.u32 %v291, 16
      %v1000 = vrot.slane %v998, 5
      %v1001 = vsel %vm339, %v996, %v1000
      %v1002 = vshrl.u32 %v291, 16
      %v1004 = vrot.slane %v1002, 4
      %v1005 = vor.u32 %v1004, %v1000
      %v1006 = vrot.slane %v1005, 4
      %v1008 = vshll.u32 %v292, 16
      %v1010 = vrot.slane %v1008, 5
      %v1011 = vsel %vm339, %v1006, %v1010
      %v1013 = vshrl.u32 %v293, 16
      %v1015 = vrot.slane %v1013, 4
      %v1016 = vshll.u32 %v293, 16
      %v1018 = vrot.slane %v1016, 5
      %v1019 = vor.u32 %v1015, %v1018
      %v1020 = vrot.slane %v1019, 4
      %v1022 = vshll.u32 %v294, 16
      %v1024 = vrot.slane %v1022, 5
      %v1025 = vsel %vm339, %v1020, %v1024
      %v1026 = vshrl.u32 %v294, 16
      %v1028 = vrot.slane %v1026, 4
      %v1029 = vor.u32 %v1028, %v1024
      %v1030 = vrot.slane %v1029, 4
      %v1032 = vshll.u32 %v295, 16
      %v1034 = vrot.slane %v1032, 5
      %v1035 = vsel %vm339, %v1030, %v1034
      %v1037 = vshrl.u32 %v296, 16
      %v1039 = vrot.slane %v1037, 4
      %v1040 = vshll.u32 %v296, 16
      %v1042 = vrot.slane %v1040, 5
      %v1043 = vor.u32 %v1039, %v1042
      %v1044 = vrot.slane %v1043, 4
      %v1046 = vshll.u32 %v297, 16
      %v1048 = vrot.slane %v1046, 5
      %v1049 = vsel %vm339, %v1044, %v1048
      %v1050 = vshrl.u32 %v297, 16
      %v1052 = vrot.slane %v1050, 4
      %v1053 = vor.u32 %v1052, %v1048
      %v1054 = vrot.slane %v1053, 4
      %v1056 = vshll.u32 %v298, 16
      %v1058 = vrot.slane %v1056, 5
      %v1059 = vsel %vm339, %v1054, %v1058
      %v1061 = vshrl.u32 %v299, 16
      %v1063 = vrot.slane %v1061, 4
      %v1064 = vshll.u32 %v299, 16
      %v1066 = vrot.slane %v1064, 5
      %v1067 = vor.u32 %v1063, %v1066
      %v1068 = vrot.slane %v1067, 4
      %v1070 = vshll.u32 %v300, 16
      %v1072 = vrot.slane %v1070, 5
      %v1073 = vsel %vm339, %v1068, %v1072
      %v1074 = vshrl.u32 %v300, 16
      %v1076 = vrot.slane %v1074, 4
      %v1077 = vor.u32 %v1076, %v1072
      %v1078 = vrot.slane %v1077, 4
      %v1080 = vshll.u32 %v301, 16
      %v1082 = vrot.slane %v1080, 5
      %v1083 = vsel %vm339, %v1078, %v1082
      %v1085 = vshrl.u32 %v302, 16
      %v1087 = vrot.slane %v1085, 4
      %v1088 = vshll.u32 %v302, 16
      %v1090 = vrot.slane %v1088, 5
      %v1091 = vor.u32 %v1087, %v1090
      %v1092 = vrot.slane %v1091, 4
      %v1094 = vshll.u32 %v303, 16
      %v1096 = vrot.slane %v1094, 5
      %v1097 = vsel %vm339, %v1092, %v1096
      %v1098 = vshrl.u32 %v303, 16
      %v1100 = vrot.slane %v1098, 4
      %v1101 = vor.u32 %v1100, %v1096
      %v1102 = vrot.slane %v1101, 4
      %v1104 = vshll.u32 %v304, 16
      %v1106 = vrot.slane %v1104, 5
      %v1107 = vsel %vm339, %v1102, %v1106
      %v1109 = vshrl.u32 %v220, 16
      %v1111 = vrot.slane %v1109, 4
      %v1112 = vshll.u32 %v220, 16
      %v1114 = vrot.slane %v1112, 5
      %v1115 = vor.u32 %v1111, %v1114
      %v1116 = vrot.slane %v1115, 4
      %v1118 = vshll.u32 %v221, 16
      %v1120 = vrot.slane %v1118, 5
      %v1121 = vsel %vm339, %v1116, %v1120
      %v1122 = vshrl.u32 %v221, 16
      %v1124 = vrot.slane %v1122, 4
      %v1125 = vor.u32 %v1124, %v1120
      %v1126 = vrot.slane %v1125, 4
      %v1128 = vshll.u32 %v222, 16
      %v1130 = vrot.slane %v1128, 5
      %v1131 = vsel %vm339, %v1126, %v1130
      %v1132 = vld [vmem:[%s1] sm:$0xf]
      %s1133 = scalar_lea.vmem %s1, 4
      %v1134 = vld [vmem:[%s1133] sm:$0xf]
      %v1167 = vunpack.c.l.b16 %v223
      %v1168 = vunpack.c.l.b16 %v224
      %v1169 = vunpack.c.l.b16 %v225
      %v1170 = vunpack.c.l.b16 %v226
      %v1171 = vunpack.c.l.b16 %v227
      %v1172 = vunpack.c.l.b16 %v228
      %v1173 = vunpack.c.l.b16 %v229
      %v1174 = vunpack.c.l.b16 %v230
      %v1175 = vunpack.c.l.b16 %v231
      %v1176 = vunpack.c.l.b16 %v232
      %v1177 = vunpack.c.l.b16 %v233
      %v1178 = vunpack.c.l.b16 %v234
      %v1179 = vunpack.c.l.b16 %v235
      %v1180 = vunpack.c.l.b16 %v236
      %v1181 = vunpack.c.l.b16 %v237
      %v1182 = vunpack.c.l.b16 %v238
      %v1183 = vunpack.c.l.b16 %v239
      %v1184 = vunpack.c.l.b16 %v240
      %v1185 = vunpack.c.l.b16 %v241
      %v1186 = vunpack.c.l.b16 %v242
      %v1187 = vunpack.c.l.b16 %v243
      %v1188 = vunpack.c.l.b16 %v244
      %v1189 = vunpack.c.l.b16 %v245
      %v1190 = vunpack.c.l.b16 %v246
      %v1191 = vunpack.c.l.b16 %v247
      %v1192 = vunpack.c.l.b16 %v248
      %v1193 = vunpack.c.l.b16 %v249
      %v1194 = vunpack.c.l.b16 %v250
      %v1195 = vunpack.c.l.b16 %v251
      %v1196 = vunpack.c.l.b16 %v252
      %v1197 = vunpack.c.l.b16 %v253
      %v1198 = vunpack.c.l.b16 %v254
      %v1199 = vpack.c.b16 %v1168, %v1167
      %v1200 = vpack.c.b16 %v1170, %v1169
      %v1201 = vpack.c.b16 %v1172, %v1171
      %v1202 = vpack.c.b16 %v1174, %v1173
      %v1203 = vpack.c.b16 %v1176, %v1175
      %v1204 = vpack.c.b16 %v1178, %v1177
      %v1205 = vpack.c.b16 %v1180, %v1179
      %v1206 = vpack.c.b16 %v1182, %v1181
      %v1207 = vpack.c.b16 %v1184, %v1183
      %v1208 = vpack.c.b16 %v1186, %v1185
      %v1209 = vpack.c.b16 %v1188, %v1187
      %v1210 = vpack.c.b16 %v1190, %v1189
      %v1211 = vpack.c.b16 %v1192, %v1191
      %v1212 = vpack.c.b16 %v1194, %v1193
      %v1213 = vpack.c.b16 %v1196, %v1195
      %v1214 = vpack.c.b16 %v1198, %v1197
      %vm1215 = vcmask 64512
      %v1217 = vsel %vm1215, %v1199, 0
      %v1220 = vsel %vm1215, %v1200, 0
      %v1223 = vsel %vm1215, %v1201, 0
      %v1226 = vsel %vm1215, %v1202, 0
      %v1229 = vsel %vm1215, %v1203, 0
      %v1232 = vsel %vm1215, %v1204, 0
      %v1235 = vsel %vm1215, %v1205, 0
      %v1238 = vsel %vm1215, %v1206, 0
      %v1241 = vsel %vm1215, %v1207, 0
      %v1244 = vsel %vm1215, %v1208, 0
      %v1247 = vsel %vm1215, %v1209, 0
      %v1250 = vsel %vm1215, %v1210, 0
      %v1253 = vsel %vm1215, %v1211, 0
      %v1256 = vsel %vm1215, %v1212, 0
      %v1259 = vsel %vm1215, %v1213, 0
      %v1262 = vsel %vm1215, %v1214, 0
      %vm1264 = vcmask 1043456
      %v1266 = vsel %vm1264, %v1134, 0
      %1268 = vmatpush.bf16.msra.mxu0 0
      %1269 = vmatpush.bf16.msra.mxu0 0
      %1270 = vmatpush.bf16.msra.mxu0 0
      %1271 = vmatpush.bf16.msra.mxu0 0
      %1272 = vmatpush.bf16.msra.mxu0 0
      %1273 = vmatpush.bf16.msra.mxu0 0
      %1274 = vmatpush.bf16.msra.mxu0 0
      %1275 = vmatpush.bf16.msra.mxu0 %v1266
      %1276 = vmatmul.bf16.gmra.mxu0 %v1217
      %v1277 = vpop.f32.mrf.mxu0
      %v1278 = vadd.f32 0.0, %v1277
      %v1279 = vpop.f32.mrf.mxu0
      %v1280 = vadd.f32 0.0, %v1279
      %1281 = vmatmul.bf16.gmra.mxu0 %v1220
      %v1282 = vpop.f32.mrf.mxu0
      %v1283 = vadd.f32 0.0, %v1282
      %v1284 = vpop.f32.mrf.mxu0
      %v1285 = vadd.f32 0.0, %v1284
      %1286 = vmatmul.bf16.gmra.mxu0 %v1223
      %v1287 = vpop.f32.mrf.mxu0
      %v1288 = vadd.f32 0.0, %v1287
      %v1289 = vpop.f32.mrf.mxu0
      %v1290 = vadd.f32 0.0, %v1289
      %1291 = vmatmul.bf16.gmra.mxu0 %v1226
      %v1292 = vpop.f32.mrf.mxu0
      %v1293 = vadd.f32 0.0, %v1292
      %v1294 = vpop.f32.mrf.mxu0
      %v1295 = vadd.f32 0.0, %v1294
      %1296 = vmatmul.bf16.gmra.mxu0 %v1229
      %v1297 = vpop.f32.mrf.mxu0
      %v1298 = vadd.f32 0.0, %v1297
      %v1299 = vpop.f32.mrf.mxu0
      %v1300 = vadd.f32 0.0, %v1299
      %1301 = vmatmul.bf16.gmra.mxu0 %v1232
      %v1302 = vpop.f32.mrf.mxu0
      %v1303 = vadd.f32 0.0, %v1302
      %v1304 = vpop.f32.mrf.mxu0
      %v1305 = vadd.f32 0.0, %v1304
      %1306 = vmatmul.bf16.gmra.mxu0 %v1235
      %v1307 = vpop.f32.mrf.mxu0
      %v1308 = vadd.f32 0.0, %v1307
      %v1309 = vpop.f32.mrf.mxu0
      %v1310 = vadd.f32 0.0, %v1309
      %1311 = vmatmul.bf16.gmra.mxu0 %v1238
      %v1312 = vpop.f32.mrf.mxu0
      %v1313 = vadd.f32 0.0, %v1312
      %v1314 = vpop.f32.mrf.mxu0
      %v1315 = vadd.f32 0.0, %v1314
      %1316 = vmatmul.bf16.gmra.mxu0 %v1241
      %v1317 = vpop.f32.mrf.mxu0
      %v1318 = vadd.f32 0.0, %v1317
      %v1319 = vpop.f32.mrf.mxu0
      %v1320 = vadd.f32 0.0, %v1319
      %1321 = vmatmul.bf16.gmra.mxu0 %v1244
      %v1322 = vpop.f32.mrf.mxu0
      %v1323 = vadd.f32 0.0, %v1322
      %v1324 = vpop.f32.mrf.mxu0
      %v1325 = vadd.f32 0.0, %v1324
      %1326 = vmatmul.bf16.gmra.mxu0 %v1247
      %v1327 = vpop.f32.mrf.mxu0
      %v1328 = vadd.f32 0.0, %v1327
      %v1329 = vpop.f32.mrf.mxu0
      %v1330 = vadd.f32 0.0, %v1329
      %1331 = vmatmul.bf16.gmra.mxu0 %v1250
      %v1332 = vpop.f32.mrf.mxu0
      %v1333 = vadd.f32 0.0, %v1332
      %v1334 = vpop.f32.mrf.mxu0
      %v1335 = vadd.f32 0.0, %v1334
      %1336 = vmatmul.bf16.gmra.mxu0 %v1253
      %v1337 = vpop.f32.mrf.mxu0
      %v1338 = vadd.f32 0.0, %v1337
      %v1339 = vpop.f32.mrf.mxu0
      %v1340 = vadd.f32 0.0, %v1339
      %1341 = vmatmul.bf16.gmra.mxu0 %v1256
      %v1342 = vpop.f32.mrf.mxu0
      %v1343 = vadd.f32 0.0, %v1342
      %v1344 = vpop.f32.mrf.mxu0
      %v1345 = vadd.f32 0.0, %v1344
      %1346 = vmatmul.bf16.gmra.mxu0 %v1259
      %v1347 = vpop.f32.mrf.mxu0
      %v1348 = vadd.f32 0.0, %v1347
      %v1349 = vpop.f32.mrf.mxu0
      %v1350 = vadd.f32 0.0, %v1349
      %1351 = vmatmul.bf16.gmra.mxu0 %v1262
      %v1352 = vpop.f32.mrf.mxu0
      %v1353 = vadd.f32 0.0, %v1352
      %v1354 = vpop.f32.mrf.mxu0
      %v1355 = vadd.f32 0.0, %v1354
      %1356 = vdwg.mxu0
      %v1389 = vunpack.c.l.b16 %v172
      %v1390 = vunpack.c.l.b16 %v173
      %v1391 = vunpack.c.l.b16 %v175
      %v1392 = vunpack.c.l.b16 %v176
      %v1393 = vunpack.c.l.b16 %v178
      %v1394 = vunpack.c.l.b16 %v179
      %v1395 = vunpack.c.l.b16 %v181
      %v1396 = vunpack.c.l.b16 %v182
      %v1397 = vunpack.c.l.b16 %v184
      %v1398 = vunpack.c.l.b16 %v185
      %v1399 = vunpack.c.l.b16 %v187
      %v1400 = vunpack.c.l.b16 %v188
      %v1401 = vunpack.c.l.b16 %v190
      %v1402 = vunpack.c.l.b16 %v191
      %v1403 = vunpack.c.l.b16 %v193
      %v1404 = vunpack.c.l.b16 %v194
      %v1405 = vunpack.c.l.b16 %v196
      %v1406 = vunpack.c.l.b16 %v197
      %v1407 = vunpack.c.l.b16 %v199
      %v1408 = vunpack.c.l.b16 %v200
      %v1409 = vunpack.c.l.b16 %v202
      %v1410 = vunpack.c.l.b16 %v203
      %v1411 = vunpack.c.l.b16 %v205
      %v1412 = vunpack.c.l.b16 %v206
      %v1413 = vunpack.c.l.b16 %v208
      %v1414 = vunpack.c.l.b16 %v209
      %v1415 = vunpack.c.l.b16 %v211
      %v1416 = vunpack.c.l.b16 %v212
      %v1417 = vunpack.c.l.b16 %v214
      %v1418 = vunpack.c.l.b16 %v215
      %v1419 = vunpack.c.l.b16 %v217
      %v1420 = vunpack.c.l.b16 %v218
      %v1421 = vpack.c.b16 %v1390, %v1389
      %v1422 = vpack.c.b16 %v1392, %v1391
      %v1423 = vpack.c.b16 %v1394, %v1393
      %v1424 = vpack.c.b16 %v1396, %v1395
      %v1425 = vpack.c.b16 %v1398, %v1397
      %v1426 = vpack.c.b16 %v1400, %v1399
      %v1427 = vpack.c.b16 %v1402, %v1401
      %v1428 = vpack.c.b16 %v1404, %v1403
      %v1429 = vpack.c.b16 %v1406, %v1405
      %v1430 = vpack.c.b16 %v1408, %v1407
      %v1431 = vpack.c.b16 %v1410, %v1409
      %v1432 = vpack.c.b16 %v1412, %v1411
      %v1433 = vpack.c.b16 %v1414, %v1413
      %v1434 = vpack.c.b16 %v1416, %v1415
      %v1435 = vpack.c.b16 %v1418, %v1417
      %v1436 = vpack.c.b16 %v1420, %v1419
      %v1438 = vsel %vm1215, %v1421, 0
      %v1441 = vsel %vm1215, %v1422, 0
      %v1444 = vsel %vm1215, %v1423, 0
      %v1447 = vsel %vm1215, %v1424, 0
      %v1450 = vsel %vm1215, %v1425, 0
      %v1453 = vsel %vm1215, %v1426, 0
      %v1456 = vsel %vm1215, %v1427, 0
      %v1459 = vsel %vm1215, %v1428, 0
      %v1462 = vsel %vm1215, %v1429, 0
      %v1465 = vsel %vm1215, %v1430, 0
      %v1468 = vsel %vm1215, %v1431, 0
      %v1471 = vsel %vm1215, %v1432, 0
      %v1474 = vsel %vm1215, %v1433, 0
      %v1477 = vsel %vm1215, %v1434, 0
      %v1480 = vsel %vm1215, %v1435, 0
      %v1483 = vsel %vm1215, %v1436, 0
      %v1486 = vsel %vm1264, %v1132, 0
      %1488 = vmatpush.bf16.msra.mxu0 0
      %1489 = vmatpush.bf16.msra.mxu0 0
      %1490 = vmatpush.bf16.msra.mxu0 0
      %1491 = vmatpush.bf16.msra.mxu0 0
      %1492 = vmatpush.bf16.msra.mxu0 0
      %1493 = vmatpush.bf16.msra.mxu0 0
      %1494 = vmatpush.bf16.msra.mxu0 0
      %1495 = vmatpush.bf16.msra.mxu0 %v1486
      %1496 = vmatmul.bf16.gmra.mxu0 %v1438
      %v1497 = vpop.f32.mrf.mxu0
      %v1498 = vadd.f32 %v1278, %v1497
      %v1499 = vpop.f32.mrf.mxu0
      %v1500 = vadd.f32 %v1280, %v1499
      %1501 = vmatmul.bf16.gmra.mxu0 %v1441
      %v1502 = vpop.f32.mrf.mxu0
      %v1503 = vadd.f32 %v1283, %v1502
      %v1504 = vpop.f32.mrf.mxu0
      %v1505 = vadd.f32 %v1285, %v1504
      %1506 = vmatmul.bf16.gmra.mxu0 %v1444
      %v1507 = vpop.f32.mrf.mxu0
      %v1508 = vadd.f32 %v1288, %v1507
      %v1509 = vpop.f32.mrf.mxu0
      %v1510 = vadd.f32 %v1290, %v1509
      %1511 = vmatmul.bf16.gmra.mxu0 %v1447
      %v1512 = vpop.f32.mrf.mxu0
      %v1513 = vadd.f32 %v1293, %v1512
      %v1514 = vpop.f32.mrf.mxu0
      %v1515 = vadd.f32 %v1295, %v1514
      %1516 = vmatmul.bf16.gmra.mxu0 %v1450
      %v1517 = vpop.f32.mrf.mxu0
      %v1518 = vadd.f32 %v1298, %v1517
      %v1519 = vpop.f32.mrf.mxu0
      %v1520 = vadd.f32 %v1300, %v1519
      %1521 = vmatmul.bf16.gmra.mxu0 %v1453
      %v1522 = vpop.f32.mrf.mxu0
      %v1523 = vadd.f32 %v1303, %v1522
      %v1524 = vpop.f32.mrf.mxu0
      %v1525 = vadd.f32 %v1305, %v1524
      %1526 = vmatmul.bf16.gmra.mxu0 %v1456
      %v1527 = vpop.f32.mrf.mxu0
      %v1528 = vadd.f32 %v1308, %v1527
      %v1529 = vpop.f32.mrf.mxu0
      %v1530 = vadd.f32 %v1310, %v1529
      %1531 = vmatmul.bf16.gmra.mxu0 %v1459
      %v1532 = vpop.f32.mrf.mxu0
      %v1533 = vadd.f32 %v1313, %v1532
      %v1534 = vpop.f32.mrf.mxu0
      %v1535 = vadd.f32 %v1315, %v1534
      %1536 = vmatmul.bf16.gmra.mxu0 %v1462
      %v1537 = vpop.f32.mrf.mxu0
      %v1538 = vadd.f32 %v1318, %v1537
      %v1539 = vpop.f32.mrf.mxu0
      %v1540 = vadd.f32 %v1320, %v1539
      %1541 = vmatmul.bf16.gmra.mxu0 %v1465
      %v1542 = vpop.f32.mrf.mxu0
      %v1543 = vadd.f32 %v1323, %v1542
      %v1544 = vpop.f32.mrf.mxu0
      %v1545 = vadd.f32 %v1325, %v1544
      %1546 = vmatmul.bf16.gmra.mxu0 %v1468
      %v1547 = vpop.f32.mrf.mxu0
      %v1548 = vadd.f32 %v1328, %v1547
      %v1549 = vpop.f32.mrf.mxu0
      %v1550 = vadd.f32 %v1330, %v1549
      %1551 = vmatmul.bf16.gmra.mxu0 %v1471
      %v1552 = vpop.f32.mrf.mxu0
      %v1553 = vadd.f32 %v1333, %v1552
      %v1554 = vpop.f32.mrf.mxu0
      %v1555 = vadd.f32 %v1335, %v1554
      %1556 = vmatmul.bf16.gmra.mxu0 %v1474
      %v1557 = vpop.f32.mrf.mxu0
      %v1558 = vadd.f32 %v1338, %v1557
      %v1559 = vpop.f32.mrf.mxu0
      %v1560 = vadd.f32 %v1340, %v1559
      %1561 = vmatmul.bf16.gmra.mxu0 %v1477
      %v1562 = vpop.f32.mrf.mxu0
      %v1563 = vadd.f32 %v1343, %v1562
      %v1564 = vpop.f32.mrf.mxu0
      %v1565 = vadd.f32 %v1345, %v1564
      %1566 = vmatmul.bf16.gmra.mxu0 %v1480
      %v1567 = vpop.f32.mrf.mxu0
      %v1568 = vadd.f32 %v1348, %v1567
      %v1569 = vpop.f32.mrf.mxu0
      %v1570 = vadd.f32 %v1350, %v1569
      %1571 = vmatmul.bf16.gmra.mxu0 %v1483
      %v1572 = vpop.f32.mrf.mxu0
      %v1573 = vadd.f32 %v1353, %v1572
      %v1574 = vpop.f32.mrf.mxu0
      %v1575 = vadd.f32 %v1355, %v1574
      %1576 = vdwg.mxu0
      %s1577 = scalar_lea.vmem %s1, 8
      %v1578 = vld [vmem:[%s1577] sm:$0xf]
      %v1579 = vunpack.c.l.b16 %v353
      %v1580 = vunpack.c.l.b16 %v363
      %v1581 = vunpack.c.l.b16 %v377
      %v1582 = vunpack.c.l.b16 %v387
      %v1583 = vunpack.c.l.b16 %v401
      %v1584 = vunpack.c.l.b16 %v411
      %v1585 = vunpack.c.l.b16 %v425
      %v1586 = vunpack.c.l.b16 %v435
      %v1587 = vunpack.c.l.b16 %v449
      %v1588 = vunpack.c.l.b16 %v459
      %v1589 = vunpack.c.l.b16 %v473
      %v1590 = vunpack.c.l.b16 %v483
      %v1591 = vunpack.c.l.b16 %v497
      %v1592 = vunpack.c.l.b16 %v507
      %v1593 = vunpack.c.l.b16 %v521
      %v1594 = vunpack.c.l.b16 %v531
      %v1595 = vunpack.c.l.b16 %v545
      %v1596 = vunpack.c.l.b16 %v555
      %v1597 = vunpack.c.l.b16 %v569
      %v1598 = vunpack.c.l.b16 %v579
      %v1599 = vunpack.c.l.b16 %v593
      %v1600 = vunpack.c.l.b16 %v603
      %v1601 = vunpack.c.l.b16 %v617
      %v1602 = vunpack.c.l.b16 %v627
      %v1603 = vunpack.c.l.b16 %v641
      %v1604 = vunpack.c.l.b16 %v651
      %v1605 = vunpack.c.l.b16 %v665
      %v1606 = vunpack.c.l.b16 %v675
      %v1607 = vunpack.c.l.b16 %v689
      %v1608 = vunpack.c.l.b16 %v699
      %v1609 = vunpack.c.l.b16 %v713
      %v1610 = vunpack.c.l.b16 %v723
      %v1611 = vpack.c.b16 %v1580, %v1579
      %v1612 = vpack.c.b16 %v1582, %v1581
      %v1613 = vpack.c.b16 %v1584, %v1583
      %v1614 = vpack.c.b16 %v1586, %v1585
      %v1615 = vpack.c.b16 %v1588, %v1587
      %v1616 = vpack.c.b16 %v1590, %v1589
      %v1617 = vpack.c.b16 %v1592, %v1591
      %v1618 = vpack.c.b16 %v1594, %v1593
      %v1619 = vpack.c.b16 %v1596, %v1595
      %v1620 = vpack.c.b16 %v1598, %v1597
      %v1621 = vpack.c.b16 %v1600, %v1599
      %v1622 = vpack.c.b16 %v1602, %v1601
      %v1623 = vpack.c.b16 %v1604, %v1603
      %v1624 = vpack.c.b16 %v1606, %v1605
      %v1625 = vpack.c.b16 %v1608, %v1607
      %v1626 = vpack.c.b16 %v1610, %v1609
      %v1628 = vsel %vm1215, %v1611, 0
      %v1631 = vsel %vm1215, %v1612, 0
      %v1634 = vsel %vm1215, %v1613, 0
      %v1637 = vsel %vm1215, %v1614, 0
      %v1640 = vsel %vm1215, %v1615, 0
      %v1643 = vsel %vm1215, %v1616, 0
      %v1646 = vsel %vm1215, %v1617, 0
      %v1649 = vsel %vm1215, %v1618, 0
      %v1652 = vsel %vm1215, %v1619, 0
      %v1655 = vsel %vm1215, %v1620, 0
      %v1658 = vsel %vm1215, %v1621, 0
      %v1661 = vsel %vm1215, %v1622, 0
      %v1664 = vsel %vm1215, %v1623, 0
      %v1667 = vsel %vm1215, %v1624, 0
      %v1670 = vsel %vm1215, %v1625, 0
      %v1673 = vsel %vm1215, %v1626, 0
      %v1676 = vsel %vm1264, %v1578, 0
      %1678 = vmatpush.bf16.msra.mxu0 0
      %1679 = vmatpush.bf16.msra.mxu0 0
      %1680 = vmatpush.bf16.msra.mxu0 0
      %1681 = vmatpush.bf16.msra.mxu0 0
      %1682 = vmatpush.bf16.msra.mxu0 0
      %1683 = vmatpush.bf16.msra.mxu0 0
      %1684 = vmatpush.bf16.msra.mxu0 0
      %1685 = vmatpush.bf16.msra.mxu0 %v1676
      %1686 = vmatmul.bf16.gmra.mxu0 %v1628
      %v1687 = vpop.f32.mrf.mxu0
      %v1688 = vadd.f32 0.0, %v1687
      %v1689 = vpop.f32.mrf.mxu0
      %v1690 = vadd.f32 0.0, %v1689
      %1691 = vmatmul.bf16.gmra.mxu0 %v1631
      %v1692 = vpop.f32.mrf.mxu0
      %v1693 = vadd.f32 0.0, %v1692
      %v1694 = vpop.f32.mrf.mxu0
      %v1695 = vadd.f32 0.0, %v1694
      %1696 = vmatmul.bf16.gmra.mxu0 %v1634
      %v1697 = vpop.f32.mrf.mxu0
      %v1698 = vadd.f32 0.0, %v1697
      %v1699 = vpop.f32.mrf.mxu0
      %v1700 = vadd.f32 0.0, %v1699
      %1701 = vmatmul.bf16.gmra.mxu0 %v1637
      %v1702 = vpop.f32.mrf.mxu0
      %v1703 = vadd.f32 0.0, %v1702
      %v1704 = vpop.f32.mrf.mxu0
      %v1705 = vadd.f32 0.0, %v1704
      %1706 = vmatmul.bf16.gmra.mxu0 %v1640
      %v1707 = vpop.f32.mrf.mxu0
      %v1708 = vadd.f32 0.0, %v1707
      %v1709 = vpop.f32.mrf.mxu0
      %v1710 = vadd.f32 0.0, %v1709
      %1711 = vmatmul.bf16.gmra.mxu0 %v1643
      %v1712 = vpop.f32.mrf.mxu0
      %v1713 = vadd.f32 0.0, %v1712
      %v1714 = vpop.f32.mrf.mxu0
      %v1715 = vadd.f32 0.0, %v1714
      %1716 = vmatmul.bf16.gmra.mxu0 %v1646
      %v1717 = vpop.f32.mrf.mxu0
      %v1718 = vadd.f32 0.0, %v1717
      %v1719 = vpop.f32.mrf.mxu0
      %v1720 = vadd.f32 0.0, %v1719
      %1721 = vmatmul.bf16.gmra.mxu0 %v1649
      %v1722 = vpop.f32.mrf.mxu0
      %v1723 = vadd.f32 0.0, %v1722
      %v1724 = vpop.f32.mrf.mxu0
      %v1725 = vadd.f32 0.0, %v1724
      %1726 = vmatmul.bf16.gmra.mxu0 %v1652
      %v1727 = vpop.f32.mrf.mxu0
      %v1728 = vadd.f32 0.0, %v1727
      %v1729 = vpop.f32.mrf.mxu0
      %v1730 = vadd.f32 0.0, %v1729
      %1731 = vmatmul.bf16.gmra.mxu0 %v1655
      %v1732 = vpop.f32.mrf.mxu0
      %v1733 = vadd.f32 0.0, %v1732
      %v1734 = vpop.f32.mrf.mxu0
      %v1735 = vadd.f32 0.0, %v1734
      %1736 = vmatmul.bf16.gmra.mxu0 %v1658
      %v1737 = vpop.f32.mrf.mxu0
      %v1738 = vadd.f32 0.0, %v1737
      %v1739 = vpop.f32.mrf.mxu0
      %v1740 = vadd.f32 0.0, %v1739
      %1741 = vmatmul.bf16.gmra.mxu0 %v1661
      %v1742 = vpop.f32.mrf.mxu0
      %v1743 = vadd.f32 0.0, %v1742
      %v1744 = vpop.f32.mrf.mxu0
      %v1745 = vadd.f32 0.0, %v1744
      %1746 = vmatmul.bf16.gmra.mxu0 %v1664
      %v1747 = vpop.f32.mrf.mxu0
      %v1748 = vadd.f32 0.0, %v1747
      %v1749 = vpop.f32.mrf.mxu0
      %v1750 = vadd.f32 0.0, %v1749
      %1751 = vmatmul.bf16.gmra.mxu0 %v1667
      %v1752 = vpop.f32.mrf.mxu0
      %v1753 = vadd.f32 0.0, %v1752
      %v1754 = vpop.f32.mrf.mxu0
      %v1755 = vadd.f32 0.0, %v1754
      %1756 = vmatmul.bf16.gmra.mxu0 %v1670
      %v1757 = vpop.f32.mrf.mxu0
      %v1758 = vadd.f32 0.0, %v1757
      %v1759 = vpop.f32.mrf.mxu0
      %v1760 = vadd.f32 0.0, %v1759
      %1761 = vmatmul.bf16.gmra.mxu0 %v1673
      %v1762 = vpop.f32.mrf.mxu0
      %v1763 = vadd.f32 0.0, %v1762
      %v1764 = vpop.f32.mrf.mxu0
      %v1765 = vadd.f32 0.0, %v1764
      %1766 = vdwg.mxu0
      %v1767 = vadd.f32 %v1498, %v1688
      %v1768 = vadd.f32 %v1500, %v1690
      %v1769 = vadd.f32 %v1503, %v1693
      %v1770 = vadd.f32 %v1505, %v1695
      %v1771 = vadd.f32 %v1508, %v1698
      %v1772 = vadd.f32 %v1510, %v1700
      %v1773 = vadd.f32 %v1513, %v1703
      %v1774 = vadd.f32 %v1515, %v1705
      %v1775 = vadd.f32 %v1518, %v1708
      %v1776 = vadd.f32 %v1520, %v1710
      %v1777 = vadd.f32 %v1523, %v1713
      %v1778 = vadd.f32 %v1525, %v1715
      %v1779 = vadd.f32 %v1528, %v1718
      %v1780 = vadd.f32 %v1530, %v1720
      %v1781 = vadd.f32 %v1533, %v1723
      %v1782 = vadd.f32 %v1535, %v1725
      %v1783 = vadd.f32 %v1538, %v1728
      %v1784 = vadd.f32 %v1540, %v1730
      %v1785 = vadd.f32 %v1543, %v1733
      %v1786 = vadd.f32 %v1545, %v1735
      %v1787 = vadd.f32 %v1548, %v1738
      %v1788 = vadd.f32 %v1550, %v1740
      %v1789 = vadd.f32 %v1553, %v1743
      %v1790 = vadd.f32 %v1555, %v1745
      %v1791 = vadd.f32 %v1558, %v1748
      %v1792 = vadd.f32 %v1560, %v1750
      %v1793 = vadd.f32 %v1563, %v1753
      %v1794 = vadd.f32 %v1565, %v1755
      %v1795 = vadd.f32 %v1568, %v1758
      %v1796 = vadd.f32 %v1570, %v1760
      %v1797 = vadd.f32 %v1573, %v1763
      %v1798 = vadd.f32 %v1575, %v1765
      %s1799 = scalar_lea.vmem %s1, 12
      %v1800 = vld [vmem:[%s1799] sm:$0xf]
      %v1833 = vunpack.c.l.b16 %v257
      %v1834 = vunpack.c.l.b16 %v258
      %v1835 = vunpack.c.l.b16 %v260
      %v1836 = vunpack.c.l.b16 %v261
      %v1837 = vunpack.c.l.b16 %v263
      %v1838 = vunpack.c.l.b16 %v264
      %v1839 = vunpack.c.l.b16 %v266
      %v1840 = vunpack.c.l.b16 %v267
      %v1841 = vunpack.c.l.b16 %v269
      %v1842 = vunpack.c.l.b16 %v270
      %v1843 = vunpack.c.l.b16 %v272
      %v1844 = vunpack.c.l.b16 %v273
      %v1845 = vunpack.c.l.b16 %v275
      %v1846 = vunpack.c.l.b16 %v276
      %v1847 = vunpack.c.l.b16 %v278
      %v1848 = vunpack.c.l.b16 %v279
      %v1849 = vunpack.c.l.b16 %v281
      %v1850 = vunpack.c.l.b16 %v282
      %v1851 = vunpack.c.l.b16 %v284
      %v1852 = vunpack.c.l.b16 %v285
      %v1853 = vunpack.c.l.b16 %v287
      %v1854 = vunpack.c.l.b16 %v288
      %v1855 = vunpack.c.l.b16 %v290
      %v1856 = vunpack.c.l.b16 %v291
      %v1857 = vunpack.c.l.b16 %v293
      %v1858 = vunpack.c.l.b16 %v294
      %v1859 = vunpack.c.l.b16 %v296
      %v1860 = vunpack.c.l.b16 %v297
      %v1861 = vunpack.c.l.b16 %v299
      %v1862 = vunpack.c.l.b16 %v300
      %v1863 = vunpack.c.l.b16 %v302
      %v1864 = vunpack.c.l.b16 %v303
      %v1865 = vpack.c.b16 %v1834, %v1833
      %v1866 = vpack.c.b16 %v1836, %v1835
      %v1867 = vpack.c.b16 %v1838, %v1837
      %v1868 = vpack.c.b16 %v1840, %v1839
      %v1869 = vpack.c.b16 %v1842, %v1841
      %v1870 = vpack.c.b16 %v1844, %v1843
      %v1871 = vpack.c.b16 %v1846, %v1845
      %v1872 = vpack.c.b16 %v1848, %v1847
      %v1873 = vpack.c.b16 %v1850, %v1849
      %v1874 = vpack.c.b16 %v1852, %v1851
      %v1875 = vpack.c.b16 %v1854, %v1853
      %v1876 = vpack.c.b16 %v1856, %v1855
      %v1877 = vpack.c.b16 %v1858, %v1857
      %v1878 = vpack.c.b16 %v1860, %v1859
      %v1879 = vpack.c.b16 %v1862, %v1861
      %v1880 = vpack.c.b16 %v1864, %v1863
      %v1882 = vsel %vm1215, %v1865, 0
      %v1885 = vsel %vm1215, %v1866, 0
      %v1888 = vsel %vm1215, %v1867, 0
      %v1891 = vsel %vm1215, %v1868, 0
      %v1894 = vsel %vm1215, %v1869, 0
      %v1897 = vsel %vm1215, %v1870, 0
      %v1900 = vsel %vm1215, %v1871, 0
      %v1903 = vsel %vm1215, %v1872, 0
      %v1906 = vsel %vm1215, %v1873, 0
      %v1909 = vsel %vm1215, %v1874, 0
      %v1912 = vsel %vm1215, %v1875, 0
      %v1915 = vsel %vm1215, %v1876, 0
      %v1918 = vsel %vm1215, %v1877, 0
      %v1921 = vsel %vm1215, %v1878, 0
      %v1924 = vsel %vm1215, %v1879, 0
      %v1927 = vsel %vm1215, %v1880, 0
      %v1930 = vsel %vm1264, %v1800, 0
      %1932 = vmatpush.bf16.msra.mxu0 0
      %1933 = vmatpush.bf16.msra.mxu0 0
      %1934 = vmatpush.bf16.msra.mxu0 0
      %1935 = vmatpush.bf16.msra.mxu0 0
      %1936 = vmatpush.bf16.msra.mxu0 0
      %1937 = vmatpush.bf16.msra.mxu0 0
      %1938 = vmatpush.bf16.msra.mxu0 0
      %1939 = vmatpush.bf16.msra.mxu0 %v1930
      %1940 = vmatmul.bf16.gmra.mxu0 %v1882
      %v1941 = vpop.f32.mrf.mxu0
      %v1942 = vadd.f32 0.0, %v1941
      %v1943 = vpop.f32.mrf.mxu0
      %v1944 = vadd.f32 0.0, %v1943
      %1945 = vmatmul.bf16.gmra.mxu0 %v1885
      %v1946 = vpop.f32.mrf.mxu0
      %v1947 = vadd.f32 0.0, %v1946
      %v1948 = vpop.f32.mrf.mxu0
      %v1949 = vadd.f32 0.0, %v1948
      %1950 = vmatmul.bf16.gmra.mxu0 %v1888
      %v1951 = vpop.f32.mrf.mxu0
      %v1952 = vadd.f32 0.0, %v1951
      %v1953 = vpop.f32.mrf.mxu0
      %v1954 = vadd.f32 0.0, %v1953
      %1955 = vmatmul.bf16.gmra.mxu0 %v1891
      %v1956 = vpop.f32.mrf.mxu0
      %v1957 = vadd.f32 0.0, %v1956
      %v1958 = vpop.f32.mrf.mxu0
      %v1959 = vadd.f32 0.0, %v1958
      %1960 = vmatmul.bf16.gmra.mxu0 %v1894
      %v1961 = vpop.f32.mrf.mxu0
      %v1962 = vadd.f32 0.0, %v1961
      %v1963 = vpop.f32.mrf.mxu0
      %v1964 = vadd.f32 0.0, %v1963
      %1965 = vmatmul.bf16.gmra.mxu0 %v1897
      %v1966 = vpop.f32.mrf.mxu0
      %v1967 = vadd.f32 0.0, %v1966
      %v1968 = vpop.f32.mrf.mxu0
      %v1969 = vadd.f32 0.0, %v1968
      %1970 = vmatmul.bf16.gmra.mxu0 %v1900
      %v1971 = vpop.f32.mrf.mxu0
      %v1972 = vadd.f32 0.0, %v1971
      %v1973 = vpop.f32.mrf.mxu0
      %v1974 = vadd.f32 0.0, %v1973
      %1975 = vmatmul.bf16.gmra.mxu0 %v1903
      %v1976 = vpop.f32.mrf.mxu0
      %v1977 = vadd.f32 0.0, %v1976
      %v1978 = vpop.f32.mrf.mxu0
      %v1979 = vadd.f32 0.0, %v1978
      %1980 = vmatmul.bf16.gmra.mxu0 %v1906
      %v1981 = vpop.f32.mrf.mxu0
      %v1982 = vadd.f32 0.0, %v1981
      %v1983 = vpop.f32.mrf.mxu0
      %v1984 = vadd.f32 0.0, %v1983
      %1985 = vmatmul.bf16.gmra.mxu0 %v1909
      %v1986 = vpop.f32.mrf.mxu0
      %v1987 = vadd.f32 0.0, %v1986
      %v1988 = vpop.f32.mrf.mxu0
      %v1989 = vadd.f32 0.0, %v1988
      %1990 = vmatmul.bf16.gmra.mxu0 %v1912
      %v1991 = vpop.f32.mrf.mxu0
      %v1992 = vadd.f32 0.0, %v1991
      %v1993 = vpop.f32.mrf.mxu0
      %v1994 = vadd.f32 0.0, %v1993
      %1995 = vmatmul.bf16.gmra.mxu0 %v1915
      %v1996 = vpop.f32.mrf.mxu0
      %v1997 = vadd.f32 0.0, %v1996
      %v1998 = vpop.f32.mrf.mxu0
      %v1999 = vadd.f32 0.0, %v1998
      %2000 = vmatmul.bf16.gmra.mxu0 %v1918
      %v2001 = vpop.f32.mrf.mxu0
      %v2002 = vadd.f32 0.0, %v2001
      %v2003 = vpop.f32.mrf.mxu0
      %v2004 = vadd.f32 0.0, %v2003
      %2005 = vmatmul.bf16.gmra.mxu0 %v1921
      %v2006 = vpop.f32.mrf.mxu0
      %v2007 = vadd.f32 0.0, %v2006
      %v2008 = vpop.f32.mrf.mxu0
      %v2009 = vadd.f32 0.0, %v2008
      %2010 = vmatmul.bf16.gmra.mxu0 %v1924
      %v2011 = vpop.f32.mrf.mxu0
      %v2012 = vadd.f32 0.0, %v2011
      %v2013 = vpop.f32.mrf.mxu0
      %v2014 = vadd.f32 0.0, %v2013
      %2015 = vmatmul.bf16.gmra.mxu0 %v1927
      %v2016 = vpop.f32.mrf.mxu0
      %v2017 = vadd.f32 0.0, %v2016
      %v2018 = vpop.f32.mrf.mxu0
      %v2019 = vadd.f32 0.0, %v2018
      %2020 = vdwg.mxu0
      %v2021 = vadd.f32 %v1767, %v1942
      %v2022 = vadd.f32 %v1768, %v1944
      %v2023 = vadd.f32 %v1769, %v1947
      %v2024 = vadd.f32 %v1770, %v1949
      %v2025 = vadd.f32 %v1771, %v1952
      %v2026 = vadd.f32 %v1772, %v1954
      %v2027 = vadd.f32 %v1773, %v1957
      %v2028 = vadd.f32 %v1774, %v1959
      %v2029 = vadd.f32 %v1775, %v1962
      %v2030 = vadd.f32 %v1776, %v1964
      %v2031 = vadd.f32 %v1777, %v1967
      %v2032 = vadd.f32 %v1778, %v1969
      %v2033 = vadd.f32 %v1779, %v1972
      %v2034 = vadd.f32 %v1780, %v1974
      %v2035 = vadd.f32 %v1781, %v1977
      %v2036 = vadd.f32 %v1782, %v1979
      %v2037 = vadd.f32 %v1783, %v1982
      %v2038 = vadd.f32 %v1784, %v1984
      %v2039 = vadd.f32 %v1785, %v1987
      %v2040 = vadd.f32 %v1786, %v1989
      %v2041 = vadd.f32 %v1787, %v1992
      %v2042 = vadd.f32 %v1788, %v1994
      %v2043 = vadd.f32 %v1789, %v1997
      %v2044 = vadd.f32 %v1790, %v1999
      %v2045 = vadd.f32 %v1791, %v2002
      %v2046 = vadd.f32 %v1792, %v2004
      %v2047 = vadd.f32 %v1793, %v2007
      %v2048 = vadd.f32 %v1794, %v2009
      %v2049 = vadd.f32 %v1795, %v2012
      %v2050 = vadd.f32 %v1796, %v2014
      %v2051 = vadd.f32 %v1797, %v2017
      %v2052 = vadd.f32 %v1798, %v2019
      %s2053 = scalar_lea.vmem %s1, 16
      %v2054 = vld [vmem:[%s2053] sm:$0xf]
      %v2087 = vunpack.c.l.b16 %v305
      %v2088 = vunpack.c.l.b16 %v306
      %v2089 = vunpack.c.l.b16 %v307
      %v2090 = vunpack.c.l.b16 %v308
      %v2091 = vunpack.c.l.b16 %v309
      %v2092 = vunpack.c.l.b16 %v310
      %v2093 = vunpack.c.l.b16 %v311
      %v2094 = vunpack.c.l.b16 %v312
      %v2095 = vunpack.c.l.b16 %v313
      %v2096 = vunpack.c.l.b16 %v314
      %v2097 = vunpack.c.l.b16 %v315
      %v2098 = vunpack.c.l.b16 %v316
      %v2099 = vunpack.c.l.b16 %v317
      %v2100 = vunpack.c.l.b16 %v318
      %v2101 = vunpack.c.l.b16 %v319
      %v2102 = vunpack.c.l.b16 %v320
      %v2103 = vunpack.c.l.b16 %v321
      %v2104 = vunpack.c.l.b16 %v322
      %v2105 = vunpack.c.l.b16 %v323
      %v2106 = vunpack.c.l.b16 %v324
      %v2107 = vunpack.c.l.b16 %v325
      %v2108 = vunpack.c.l.b16 %v326
      %v2109 = vunpack.c.l.b16 %v327
      %v2110 = vunpack.c.l.b16 %v328
      %v2111 = vunpack.c.l.b16 %v329
      %v2112 = vunpack.c.l.b16 %v330
      %v2113 = vunpack.c.l.b16 %v331
      %v2114 = vunpack.c.l.b16 %v332
      %v2115 = vunpack.c.l.b16 %v333
      %v2116 = vunpack.c.l.b16 %v334
      %v2117 = vunpack.c.l.b16 %v335
      %v2118 = vunpack.c.l.b16 %v336
      %v2119 = vpack.c.b16 %v2088, %v2087
      %v2120 = vpack.c.b16 %v2090, %v2089
      %v2121 = vpack.c.b16 %v2092, %v2091
      %v2122 = vpack.c.b16 %v2094, %v2093
      %v2123 = vpack.c.b16 %v2096, %v2095
      %v2124 = vpack.c.b16 %v2098, %v2097
      %v2125 = vpack.c.b16 %v2100, %v2099
      %v2126 = vpack.c.b16 %v2102, %v2101
      %v2127 = vpack.c.b16 %v2104, %v2103
      %v2128 = vpack.c.b16 %v2106, %v2105
      %v2129 = vpack.c.b16 %v2108, %v2107
      %v2130 = vpack.c.b16 %v2110, %v2109
      %v2131 = vpack.c.b16 %v2112, %v2111
      %v2132 = vpack.c.b16 %v2114, %v2113
      %v2133 = vpack.c.b16 %v2116, %v2115
      %v2134 = vpack.c.b16 %v2118, %v2117
      %v2136 = vsel %vm1215, %v2119, 0
      %v2139 = vsel %vm1215, %v2120, 0
      %v2142 = vsel %vm1215, %v2121, 0
      %v2145 = vsel %vm1215, %v2122, 0
      %v2148 = vsel %vm1215, %v2123, 0
      %v2151 = vsel %vm1215, %v2124, 0
      %v2154 = vsel %vm1215, %v2125, 0
      %v2157 = vsel %vm1215, %v2126, 0
      %v2160 = vsel %vm1215, %v2127, 0
      %v2163 = vsel %vm1215, %v2128, 0
      %v2166 = vsel %vm1215, %v2129, 0
      %v2169 = vsel %vm1215, %v2130, 0
      %v2172 = vsel %vm1215, %v2131, 0
      %v2175 = vsel %vm1215, %v2132, 0
      %v2178 = vsel %vm1215, %v2133, 0
      %v2181 = vsel %vm1215, %v2134, 0
      %v2184 = vsel %vm1264, %v2054, 0
      %2186 = vmatpush.bf16.msra.mxu0 0
      %2187 = vmatpush.bf16.msra.mxu0 0
      %2188 = vmatpush.bf16.msra.mxu0 0
      %2189 = vmatpush.bf16.msra.mxu0 0
      %2190 = vmatpush.bf16.msra.mxu0 0
      %2191 = vmatpush.bf16.msra.mxu0 0
      %2192 = vmatpush.bf16.msra.mxu0 0
      %2193 = vmatpush.bf16.msra.mxu0 %v2184
      %2194 = vmatmul.bf16.gmra.mxu0 %v2136
      %v2195 = vpop.f32.mrf.mxu0
      %v2196 = vadd.f32 0.0, %v2195
      %v2197 = vpop.f32.mrf.mxu0
      %v2198 = vadd.f32 0.0, %v2197
      %2199 = vmatmul.bf16.gmra.mxu0 %v2139
      %v2200 = vpop.f32.mrf.mxu0
      %v2201 = vadd.f32 0.0, %v2200
      %v2202 = vpop.f32.mrf.mxu0
      %v2203 = vadd.f32 0.0, %v2202
      %2204 = vmatmul.bf16.gmra.mxu0 %v2142
      %v2205 = vpop.f32.mrf.mxu0
      %v2206 = vadd.f32 0.0, %v2205
      %v2207 = vpop.f32.mrf.mxu0
      %v2208 = vadd.f32 0.0, %v2207
      %2209 = vmatmul.bf16.gmra.mxu0 %v2145
      %v2210 = vpop.f32.mrf.mxu0
      %v2211 = vadd.f32 0.0, %v2210
      %v2212 = vpop.f32.mrf.mxu0
      %v2213 = vadd.f32 0.0, %v2212
      %2214 = vmatmul.bf16.gmra.mxu0 %v2148
      %v2215 = vpop.f32.mrf.mxu0
      %v2216 = vadd.f32 0.0, %v2215
      %v2217 = vpop.f32.mrf.mxu0
      %v2218 = vadd.f32 0.0, %v2217
      %2219 = vmatmul.bf16.gmra.mxu0 %v2151
      %v2220 = vpop.f32.mrf.mxu0
      %v2221 = vadd.f32 0.0, %v2220
      %v2222 = vpop.f32.mrf.mxu0
      %v2223 = vadd.f32 0.0, %v2222
      %2224 = vmatmul.bf16.gmra.mxu0 %v2154
      %v2225 = vpop.f32.mrf.mxu0
      %v2226 = vadd.f32 0.0, %v2225
      %v2227 = vpop.f32.mrf.mxu0
      %v2228 = vadd.f32 0.0, %v2227
      %2229 = vmatmul.bf16.gmra.mxu0 %v2157
      %v2230 = vpop.f32.mrf.mxu0
      %v2231 = vadd.f32 0.0, %v2230
      %v2232 = vpop.f32.mrf.mxu0
      %v2233 = vadd.f32 0.0, %v2232
      %2234 = vmatmul.bf16.gmra.mxu0 %v2160
      %v2235 = vpop.f32.mrf.mxu0
      %v2236 = vadd.f32 0.0, %v2235
      %v2237 = vpop.f32.mrf.mxu0
      %v2238 = vadd.f32 0.0, %v2237
      %2239 = vmatmul.bf16.gmra.mxu0 %v2163
      %v2240 = vpop.f32.mrf.mxu0
      %v2241 = vadd.f32 0.0, %v2240
      %v2242 = vpop.f32.mrf.mxu0
      %v2243 = vadd.f32 0.0, %v2242
      %2244 = vmatmul.bf16.gmra.mxu0 %v2166
      %v2245 = vpop.f32.mrf.mxu0
      %v2246 = vadd.f32 0.0, %v2245
      %v2247 = vpop.f32.mrf.mxu0
      %v2248 = vadd.f32 0.0, %v2247
      %2249 = vmatmul.bf16.gmra.mxu0 %v2169
      %v2250 = vpop.f32.mrf.mxu0
      %v2251 = vadd.f32 0.0, %v2250
      %v2252 = vpop.f32.mrf.mxu0
      %v2253 = vadd.f32 0.0, %v2252
      %2254 = vmatmul.bf16.gmra.mxu0 %v2172
      %v2255 = vpop.f32.mrf.mxu0
      %v2256 = vadd.f32 0.0, %v2255
      %v2257 = vpop.f32.mrf.mxu0
      %v2258 = vadd.f32 0.0, %v2257
      %2259 = vmatmul.bf16.gmra.mxu0 %v2175
      %v2260 = vpop.f32.mrf.mxu0
      %v2261 = vadd.f32 0.0, %v2260
      %v2262 = vpop.f32.mrf.mxu0
      %v2263 = vadd.f32 0.0, %v2262
      %2264 = vmatmul.bf16.gmra.mxu0 %v2178
      %v2265 = vpop.f32.mrf.mxu0
      %v2266 = vadd.f32 0.0, %v2265
      %v2267 = vpop.f32.mrf.mxu0
      %v2268 = vadd.f32 0.0, %v2267
      %2269 = vmatmul.bf16.gmra.mxu0 %v2181
      %v2270 = vpop.f32.mrf.mxu0
      %v2271 = vadd.f32 0.0, %v2270
      %v2272 = vpop.f32.mrf.mxu0
      %v2273 = vadd.f32 0.0, %v2272
      %2274 = vdwg.mxu0
      %v2275 = vadd.f32 %v2021, %v2196
      %v2276 = vadd.f32 %v2022, %v2198
      %v2277 = vadd.f32 %v2023, %v2201
      %v2278 = vadd.f32 %v2024, %v2203
      %v2279 = vadd.f32 %v2025, %v2206
      %v2280 = vadd.f32 %v2026, %v2208
      %v2281 = vadd.f32 %v2027, %v2211
      %v2282 = vadd.f32 %v2028, %v2213
      %v2283 = vadd.f32 %v2029, %v2216
      %v2284 = vadd.f32 %v2030, %v2218
      %v2285 = vadd.f32 %v2031, %v2221
      %v2286 = vadd.f32 %v2032, %v2223
      %v2287 = vadd.f32 %v2033, %v2226
      %v2288 = vadd.f32 %v2034, %v2228
      %v2289 = vadd.f32 %v2035, %v2231
      %v2290 = vadd.f32 %v2036, %v2233
      %v2291 = vadd.f32 %v2037, %v2236
      %v2292 = vadd.f32 %v2038, %v2238
      %v2293 = vadd.f32 %v2039, %v2241
      %v2294 = vadd.f32 %v2040, %v2243
      %v2295 = vadd.f32 %v2041, %v2246
      %v2296 = vadd.f32 %v2042, %v2248
      %v2297 = vadd.f32 %v2043, %v2251
      %v2298 = vadd.f32 %v2044, %v2253
      %v2299 = vadd.f32 %v2045, %v2256
      %v2300 = vadd.f32 %v2046, %v2258
      %v2301 = vadd.f32 %v2047, %v2261
      %v2302 = vadd.f32 %v2048, %v2263
      %v2303 = vadd.f32 %v2049, %v2266
      %v2304 = vadd.f32 %v2050, %v2268
      %v2305 = vadd.f32 %v2051, %v2271
      %v2306 = vadd.f32 %v2052, %v2273
      %s2307 = scalar_lea.vmem %s1, 20
      %v2308 = vld [vmem:[%s2307] sm:$0xf]
      %v2309 = vunpack.c.l.b16 %v737
      %v2310 = vunpack.c.l.b16 %v747
      %v2311 = vunpack.c.l.b16 %v761
      %v2312 = vunpack.c.l.b16 %v771
      %v2313 = vunpack.c.l.b16 %v785
      %v2314 = vunpack.c.l.b16 %v795
      %v2315 = vunpack.c.l.b16 %v809
      %v2316 = vunpack.c.l.b16 %v819
      %v2317 = vunpack.c.l.b16 %v833
      %v2318 = vunpack.c.l.b16 %v843
      %v2319 = vunpack.c.l.b16 %v857
      %v2320 = vunpack.c.l.b16 %v867
      %v2321 = vunpack.c.l.b16 %v881
      %v2322 = vunpack.c.l.b16 %v891
      %v2323 = vunpack.c.l.b16 %v905
      %v2324 = vunpack.c.l.b16 %v915
      %v2325 = vunpack.c.l.b16 %v929
      %v2326 = vunpack.c.l.b16 %v939
      %v2327 = vunpack.c.l.b16 %v953
      %v2328 = vunpack.c.l.b16 %v963
      %v2329 = vunpack.c.l.b16 %v977
      %v2330 = vunpack.c.l.b16 %v987
      %v2331 = vunpack.c.l.b16 %v1001
      %v2332 = vunpack.c.l.b16 %v1011
      %v2333 = vunpack.c.l.b16 %v1025
      %v2334 = vunpack.c.l.b16 %v1035
      %v2335 = vunpack.c.l.b16 %v1049
      %v2336 = vunpack.c.l.b16 %v1059
      %v2337 = vunpack.c.l.b16 %v1073
      %v2338 = vunpack.c.l.b16 %v1083
      %v2339 = vunpack.c.l.b16 %v1097
      %v2340 = vunpack.c.l.b16 %v1107
      %v2341 = vpack.c.b16 %v2310, %v2309
      %v2342 = vpack.c.b16 %v2312, %v2311
      %v2343 = vpack.c.b16 %v2314, %v2313
      %v2344 = vpack.c.b16 %v2316, %v2315
      %v2345 = vpack.c.b16 %v2318, %v2317
      %v2346 = vpack.c.b16 %v2320, %v2319
      %v2347 = vpack.c.b16 %v2322, %v2321
      %v2348 = vpack.c.b16 %v2324, %v2323
      %v2349 = vpack.c.b16 %v2326, %v2325
      %v2350 = vpack.c.b16 %v2328, %v2327
      %v2351 = vpack.c.b16 %v2330, %v2329
      %v2352 = vpack.c.b16 %v2332, %v2331
      %v2353 = vpack.c.b16 %v2334, %v2333
      %v2354 = vpack.c.b16 %v2336, %v2335
      %v2355 = vpack.c.b16 %v2338, %v2337
      %v2356 = vpack.c.b16 %v2340, %v2339
      %v2358 = vsel %vm1215, %v2341, 0
      %v2361 = vsel %vm1215, %v2342, 0
      %v2364 = vsel %vm1215, %v2343, 0
      %v2367 = vsel %vm1215, %v2344, 0
      %v2370 = vsel %vm1215, %v2345, 0
      %v2373 = vsel %vm1215, %v2346, 0
      %v2376 = vsel %vm1215, %v2347, 0
      %v2379 = vsel %vm1215, %v2348, 0
      %v2382 = vsel %vm1215, %v2349, 0
      %v2385 = vsel %vm1215, %v2350, 0
      %v2388 = vsel %vm1215, %v2351, 0
      %v2391 = vsel %vm1215, %v2352, 0
      %v2394 = vsel %vm1215, %v2353, 0
      %v2397 = vsel %vm1215, %v2354, 0
      %v2400 = vsel %vm1215, %v2355, 0
      %v2403 = vsel %vm1215, %v2356, 0
      %v2406 = vsel %vm1264, %v2308, 0
      %2408 = vmatpush.bf16.msra.mxu0 0
      %2409 = vmatpush.bf16.msra.mxu0 0
      %2410 = vmatpush.bf16.msra.mxu0 0
      %2411 = vmatpush.bf16.msra.mxu0 0
      %2412 = vmatpush.bf16.msra.mxu0 0
      %2413 = vmatpush.bf16.msra.mxu0 0
      %2414 = vmatpush.bf16.msra.mxu0 0
      %2415 = vmatpush.bf16.msra.mxu0 %v2406
      %2416 = vmatmul.bf16.gmra.mxu0 %v2358
      %v2417 = vpop.f32.mrf.mxu0
      %v2418 = vadd.f32 0.0, %v2417
      %v2419 = vpop.f32.mrf.mxu0
      %v2420 = vadd.f32 0.0, %v2419
      %2421 = vmatmul.bf16.gmra.mxu0 %v2361
      %v2422 = vpop.f32.mrf.mxu0
      %v2423 = vadd.f32 0.0, %v2422
      %v2424 = vpop.f32.mrf.mxu0
      %v2425 = vadd.f32 0.0, %v2424
      %2426 = vmatmul.bf16.gmra.mxu0 %v2364
      %v2427 = vpop.f32.mrf.mxu0
      %v2428 = vadd.f32 0.0, %v2427
      %v2429 = vpop.f32.mrf.mxu0
      %v2430 = vadd.f32 0.0, %v2429
      %2431 = vmatmul.bf16.gmra.mxu0 %v2367
      %v2432 = vpop.f32.mrf.mxu0
      %v2433 = vadd.f32 0.0, %v2432
      %v2434 = vpop.f32.mrf.mxu0
      %v2435 = vadd.f32 0.0, %v2434
      %2436 = vmatmul.bf16.gmra.mxu0 %v2370
      %v2437 = vpop.f32.mrf.mxu0
      %v2438 = vadd.f32 0.0, %v2437
      %v2439 = vpop.f32.mrf.mxu0
      %v2440 = vadd.f32 0.0, %v2439
      %2441 = vmatmul.bf16.gmra.mxu0 %v2373
      %v2442 = vpop.f32.mrf.mxu0
      %v2443 = vadd.f32 0.0, %v2442
      %v2444 = vpop.f32.mrf.mxu0
      %v2445 = vadd.f32 0.0, %v2444
      %2446 = vmatmul.bf16.gmra.mxu0 %v2376
      %v2447 = vpop.f32.mrf.mxu0
      %v2448 = vadd.f32 0.0, %v2447
      %v2449 = vpop.f32.mrf.mxu0
      %v2450 = vadd.f32 0.0, %v2449
      %2451 = vmatmul.bf16.gmra.mxu0 %v2379
      %v2452 = vpop.f32.mrf.mxu0
      %v2453 = vadd.f32 0.0, %v2452
      %v2454 = vpop.f32.mrf.mxu0
      %v2455 = vadd.f32 0.0, %v2454
      %2456 = vmatmul.bf16.gmra.mxu0 %v2382
      %v2457 = vpop.f32.mrf.mxu0
      %v2458 = vadd.f32 0.0, %v2457
      %v2459 = vpop.f32.mrf.mxu0
      %v2460 = vadd.f32 0.0, %v2459
      %2461 = vmatmul.bf16.gmra.mxu0 %v2385
      %v2462 = vpop.f32.mrf.mxu0
      %v2463 = vadd.f32 0.0, %v2462
      %v2464 = vpop.f32.mrf.mxu0
      %v2465 = vadd.f32 0.0, %v2464
      %2466 = vmatmul.bf16.gmra.mxu0 %v2388
      %v2467 = vpop.f32.mrf.mxu0
      %v2468 = vadd.f32 0.0, %v2467
      %v2469 = vpop.f32.mrf.mxu0
      %v2470 = vadd.f32 0.0, %v2469
      %2471 = vmatmul.bf16.gmra.mxu0 %v2391
      %v2472 = vpop.f32.mrf.mxu0
      %v2473 = vadd.f32 0.0, %v2472
      %v2474 = vpop.f32.mrf.mxu0
      %v2475 = vadd.f32 0.0, %v2474
      %2476 = vmatmul.bf16.gmra.mxu0 %v2394
      %v2477 = vpop.f32.mrf.mxu0
      %v2478 = vadd.f32 0.0, %v2477
      %v2479 = vpop.f32.mrf.mxu0
      %v2480 = vadd.f32 0.0, %v2479
      %2481 = vmatmul.bf16.gmra.mxu0 %v2397
      %v2482 = vpop.f32.mrf.mxu0
      %v2483 = vadd.f32 0.0, %v2482
      %v2484 = vpop.f32.mrf.mxu0
      %v2485 = vadd.f32 0.0, %v2484
      %2486 = vmatmul.bf16.gmra.mxu0 %v2400
      %v2487 = vpop.f32.mrf.mxu0
      %v2488 = vadd.f32 0.0, %v2487
      %v2489 = vpop.f32.mrf.mxu0
      %v2490 = vadd.f32 0.0, %v2489
      %2491 = vmatmul.bf16.gmra.mxu0 %v2403
      %v2492 = vpop.f32.mrf.mxu0
      %v2493 = vadd.f32 0.0, %v2492
      %v2494 = vpop.f32.mrf.mxu0
      %v2495 = vadd.f32 0.0, %v2494
      %2496 = vdwg.mxu0
      %v2497 = vadd.f32 %v2275, %v2418
      %v2498 = vadd.f32 %v2276, %v2420
      %v2499 = vadd.f32 %v2277, %v2423
      %v2500 = vadd.f32 %v2278, %v2425
      %v2501 = vadd.f32 %v2279, %v2428
      %v2502 = vadd.f32 %v2280, %v2430
      %v2503 = vadd.f32 %v2281, %v2433
      %v2504 = vadd.f32 %v2282, %v2435
      %v2505 = vadd.f32 %v2283, %v2438
      %v2506 = vadd.f32 %v2284, %v2440
      %v2507 = vadd.f32 %v2285, %v2443
      %v2508 = vadd.f32 %v2286, %v2445
      %v2509 = vadd.f32 %v2287, %v2448
      %v2510 = vadd.f32 %v2288, %v2450
      %v2511 = vadd.f32 %v2289, %v2453
      %v2512 = vadd.f32 %v2290, %v2455
      %v2513 = vadd.f32 %v2291, %v2458
      %v2514 = vadd.f32 %v2292, %v2460
      %v2515 = vadd.f32 %v2293, %v2463
      %v2516 = vadd.f32 %v2294, %v2465
      %v2517 = vadd.f32 %v2295, %v2468
      %v2518 = vadd.f32 %v2296, %v2470
      %v2519 = vadd.f32 %v2297, %v2473
      %v2520 = vadd.f32 %v2298, %v2475
      %v2521 = vadd.f32 %v2299, %v2478
      %v2522 = vadd.f32 %v2300, %v2480
      %v2523 = vadd.f32 %v2301, %v2483
      %v2524 = vadd.f32 %v2302, %v2485
      %v2525 = vadd.f32 %v2303, %v2488
      %v2526 = vadd.f32 %v2304, %v2490
      %v2527 = vadd.f32 %v2305, %v2493
      %v2528 = vadd.f32 %v2306, %v2495
      %s2529 = scalar_lea.vmem %s1, 24
      %v2530 = vld [vmem:[%s2529] sm:$0xf]
      %v2533 = vunpack.c.l.b16 %v220
      %v2534 = vunpack.c.l.b16 %v221
      %v2535 = vpack.c.b16 %v2534, %v2533
      %v2537 = vsel %vm1215, %v2535, 0
      %v2540 = vsel %vm1264, %v2530, 0
      %2542 = vmatpush.bf16.msra.mxu0 0
      %2543 = vmatpush.bf16.msra.mxu0 0
      %2544 = vmatpush.bf16.msra.mxu0 0
      %2545 = vmatpush.bf16.msra.mxu0 0
      %2546 = vmatpush.bf16.msra.mxu0 0
      %2547 = vmatpush.bf16.msra.mxu0 0
      %2548 = vmatpush.bf16.msra.mxu0 0
      %2549 = vmatpush.bf16.msra.mxu0 %v2540
      %2550 = vmatmul.bf16.gmra.mxu0 %v1441
      %v2551 = vpop.f32.mrf.mxu0
      %v2552 = vadd.f32 0.0, %v2551
      %v2553 = vpop.f32.mrf.mxu0
      %v2554 = vadd.f32 0.0, %v2553
      %2555 = vmatmul.bf16.gmra.mxu0 %v1444
      %v2556 = vpop.f32.mrf.mxu0
      %v2557 = vadd.f32 0.0, %v2556
      %v2558 = vpop.f32.mrf.mxu0
      %v2559 = vadd.f32 0.0, %v2558
      %2560 = vmatmul.bf16.gmra.mxu0 %v1447
      %v2561 = vpop.f32.mrf.mxu0
      %v2562 = vadd.f32 0.0, %v2561
      %v2563 = vpop.f32.mrf.mxu0
      %v2564 = vadd.f32 0.0, %v2563
      %2565 = vmatmul.bf16.gmra.mxu0 %v1450
      %v2566 = vpop.f32.mrf.mxu0
      %v2567 = vadd.f32 0.0, %v2566
      %v2568 = vpop.f32.mrf.mxu0
      %v2569 = vadd.f32 0.0, %v2568
      %2570 = vmatmul.bf16.gmra.mxu0 %v1453
      %v2571 = vpop.f32.mrf.mxu0
      %v2572 = vadd.f32 0.0, %v2571
      %v2573 = vpop.f32.mrf.mxu0
      %v2574 = vadd.f32 0.0, %v2573
      %2575 = vmatmul.bf16.gmra.mxu0 %v1456
      %v2576 = vpop.f32.mrf.mxu0
      %v2577 = vadd.f32 0.0, %v2576
      %v2578 = vpop.f32.mrf.mxu0
      %v2579 = vadd.f32 0.0, %v2578
      %2580 = vmatmul.bf16.gmra.mxu0 %v1459
      %v2581 = vpop.f32.mrf.mxu0
      %v2582 = vadd.f32 0.0, %v2581
      %v2583 = vpop.f32.mrf.mxu0
      %v2584 = vadd.f32 0.0, %v2583
      %2585 = vmatmul.bf16.gmra.mxu0 %v1462
      %v2586 = vpop.f32.mrf.mxu0
      %v2587 = vadd.f32 0.0, %v2586
      %v2588 = vpop.f32.mrf.mxu0
      %v2589 = vadd.f32 0.0, %v2588
      %2590 = vmatmul.bf16.gmra.mxu0 %v1465
      %v2591 = vpop.f32.mrf.mxu0
      %v2592 = vadd.f32 0.0, %v2591
      %v2593 = vpop.f32.mrf.mxu0
      %v2594 = vadd.f32 0.0, %v2593
      %2595 = vmatmul.bf16.gmra.mxu0 %v1468
      %v2596 = vpop.f32.mrf.mxu0
      %v2597 = vadd.f32 0.0, %v2596
      %v2598 = vpop.f32.mrf.mxu0
      %v2599 = vadd.f32 0.0, %v2598
      %2600 = vmatmul.bf16.gmra.mxu0 %v1471
      %v2601 = vpop.f32.mrf.mxu0
      %v2602 = vadd.f32 0.0, %v2601
      %v2603 = vpop.f32.mrf.mxu0
      %v2604 = vadd.f32 0.0, %v2603
      %2605 = vmatmul.bf16.gmra.mxu0 %v1474
      %v2606 = vpop.f32.mrf.mxu0
      %v2607 = vadd.f32 0.0, %v2606
      %v2608 = vpop.f32.mrf.mxu0
      %v2609 = vadd.f32 0.0, %v2608
      %2610 = vmatmul.bf16.gmra.mxu0 %v1477
      %v2611 = vpop.f32.mrf.mxu0
      %v2612 = vadd.f32 0.0, %v2611
      %v2613 = vpop.f32.mrf.mxu0
      %v2614 = vadd.f32 0.0, %v2613
      %2615 = vmatmul.bf16.gmra.mxu0 %v1480
      %v2616 = vpop.f32.mrf.mxu0
      %v2617 = vadd.f32 0.0, %v2616
      %v2618 = vpop.f32.mrf.mxu0
      %v2619 = vadd.f32 0.0, %v2618
      %2620 = vmatmul.bf16.gmra.mxu0 %v1483
      %v2621 = vpop.f32.mrf.mxu0
      %v2622 = vadd.f32 0.0, %v2621
      %v2623 = vpop.f32.mrf.mxu0
      %v2624 = vadd.f32 0.0, %v2623
      %2625 = vmatmul.bf16.gmra.mxu0 %v2537
      %v2626 = vpop.f32.mrf.mxu0
      %v2627 = vadd.f32 0.0, %v2626
      %v2628 = vpop.f32.mrf.mxu0
      %v2629 = vadd.f32 0.0, %v2628
      %2630 = vdwg.mxu0
      %v2631 = vadd.f32 %v2497, %v2552
      %v2632 = vadd.f32 %v2498, %v2554
      %v2633 = vadd.f32 %v2499, %v2557
      %v2634 = vadd.f32 %v2500, %v2559
      %v2635 = vadd.f32 %v2501, %v2562
      %v2636 = vadd.f32 %v2502, %v2564
      %v2637 = vadd.f32 %v2503, %v2567
      %v2638 = vadd.f32 %v2504, %v2569
      %v2639 = vadd.f32 %v2505, %v2572
      %v2640 = vadd.f32 %v2506, %v2574
      %v2641 = vadd.f32 %v2507, %v2577
      %v2642 = vadd.f32 %v2508, %v2579
      %v2643 = vadd.f32 %v2509, %v2582
      %v2644 = vadd.f32 %v2510, %v2584
      %v2645 = vadd.f32 %v2511, %v2587
      %v2646 = vadd.f32 %v2512, %v2589
      %v2647 = vadd.f32 %v2513, %v2592
      %v2648 = vadd.f32 %v2514, %v2594
      %v2649 = vadd.f32 %v2515, %v2597
      %v2650 = vadd.f32 %v2516, %v2599
      %v2651 = vadd.f32 %v2517, %v2602
      %v2652 = vadd.f32 %v2518, %v2604
      %v2653 = vadd.f32 %v2519, %v2607
      %v2654 = vadd.f32 %v2520, %v2609
      %v2655 = vadd.f32 %v2521, %v2612
      %v2656 = vadd.f32 %v2522, %v2614
      %v2657 = vadd.f32 %v2523, %v2617
      %v2658 = vadd.f32 %v2524, %v2619
      %v2659 = vadd.f32 %v2525, %v2622
      %v2660 = vadd.f32 %v2526, %v2624
      %v2661 = vadd.f32 %v2527, %v2627
      %v2662 = vadd.f32 %v2528, %v2629
      %s2663 = scalar_lea.vmem %s1, 28
      %v2664 = vld [vmem:[%s2663] sm:$0xf]
      %v2667 = vunpack.c.l.b16 %v255
      %v2668 = vunpack.c.l.b16 %v256
      %v2669 = vpack.c.b16 %v2668, %v2667
      %v2671 = vsel %vm1215, %v2669, 0
      %v2674 = vsel %vm1264, %v2664, 0
      %2676 = vmatpush.bf16.msra.mxu0 0
      %2677 = vmatpush.bf16.msra.mxu0 0
      %2678 = vmatpush.bf16.msra.mxu0 0
      %2679 = vmatpush.bf16.msra.mxu0 0
      %2680 = vmatpush.bf16.msra.mxu0 0
      %2681 = vmatpush.bf16.msra.mxu0 0
      %2682 = vmatpush.bf16.msra.mxu0 0
      %2683 = vmatpush.bf16.msra.mxu0 %v2674
      %2684 = vmatmul.bf16.gmra.mxu0 %v1220
      %v2685 = vpop.f32.mrf.mxu0
      %v2686 = vadd.f32 0.0, %v2685
      %v2687 = vpop.f32.mrf.mxu0
      %v2688 = vadd.f32 0.0, %v2687
      %2689 = vmatmul.bf16.gmra.mxu0 %v1223
      %v2690 = vpop.f32.mrf.mxu0
      %v2691 = vadd.f32 0.0, %v2690
      %v2692 = vpop.f32.mrf.mxu0
      %v2693 = vadd.f32 0.0, %v2692
      %2694 = vmatmul.bf16.gmra.mxu0 %v1226
      %v2695 = vpop.f32.mrf.mxu0
      %v2696 = vadd.f32 0.0, %v2695
      %v2697 = vpop.f32.mrf.mxu0
      %v2698 = vadd.f32 0.0, %v2697
      %2699 = vmatmul.bf16.gmra.mxu0 %v1229
      %v2700 = vpop.f32.mrf.mxu0
      %v2701 = vadd.f32 0.0, %v2700
      %v2702 = vpop.f32.mrf.mxu0
      %v2703 = vadd.f32 0.0, %v2702
      %2704 = vmatmul.bf16.gmra.mxu0 %v1232
      %v2705 = vpop.f32.mrf.mxu0
      %v2706 = vadd.f32 0.0, %v2705
      %v2707 = vpop.f32.mrf.mxu0
      %v2708 = vadd.f32 0.0, %v2707
      %2709 = vmatmul.bf16.gmra.mxu0 %v1235
      %v2710 = vpop.f32.mrf.mxu0
      %v2711 = vadd.f32 0.0, %v2710
      %v2712 = vpop.f32.mrf.mxu0
      %v2713 = vadd.f32 0.0, %v2712
      %2714 = vmatmul.bf16.gmra.mxu0 %v1238
      %v2715 = vpop.f32.mrf.mxu0
      %v2716 = vadd.f32 0.0, %v2715
      %v2717 = vpop.f32.mrf.mxu0
      %v2718 = vadd.f32 0.0, %v2717
      %2719 = vmatmul.bf16.gmra.mxu0 %v1241
      %v2720 = vpop.f32.mrf.mxu0
      %v2721 = vadd.f32 0.0, %v2720
      %v2722 = vpop.f32.mrf.mxu0
      %v2723 = vadd.f32 0.0, %v2722
      %2724 = vmatmul.bf16.gmra.mxu0 %v1244
      %v2725 = vpop.f32.mrf.mxu0
      %v2726 = vadd.f32 0.0, %v2725
      %v2727 = vpop.f32.mrf.mxu0
      %v2728 = vadd.f32 0.0, %v2727
      %2729 = vmatmul.bf16.gmra.mxu0 %v1247
      %v2730 = vpop.f32.mrf.mxu0
      %v2731 = vadd.f32 0.0, %v2730
      %v2732 = vpop.f32.mrf.mxu0
      %v2733 = vadd.f32 0.0, %v2732
      %2734 = vmatmul.bf16.gmra.mxu0 %v1250
      %v2735 = vpop.f32.mrf.mxu0
      %v2736 = vadd.f32 0.0, %v2735
      %v2737 = vpop.f32.mrf.mxu0
      %v2738 = vadd.f32 0.0, %v2737
      %2739 = vmatmul.bf16.gmra.mxu0 %v1253
      %v2740 = vpop.f32.mrf.mxu0
      %v2741 = vadd.f32 0.0, %v2740
      %v2742 = vpop.f32.mrf.mxu0
      %v2743 = vadd.f32 0.0, %v2742
      %2744 = vmatmul.bf16.gmra.mxu0 %v1256
      %v2745 = vpop.f32.mrf.mxu0
      %v2746 = vadd.f32 0.0, %v2745
      %v2747 = vpop.f32.mrf.mxu0
      %v2748 = vadd.f32 0.0, %v2747
      %2749 = vmatmul.bf16.gmra.mxu0 %v1259
      %v2750 = vpop.f32.mrf.mxu0
      %v2751 = vadd.f32 0.0, %v2750
      %v2752 = vpop.f32.mrf.mxu0
      %v2753 = vadd.f32 0.0, %v2752
      %2754 = vmatmul.bf16.gmra.mxu0 %v1262
      %v2755 = vpop.f32.mrf.mxu0
      %v2756 = vadd.f32 0.0, %v2755
      %v2757 = vpop.f32.mrf.mxu0
      %v2758 = vadd.f32 0.0, %v2757
      %2759 = vmatmul.bf16.gmra.mxu0 %v2671
      %v2760 = vpop.f32.mrf.mxu0
      %v2761 = vadd.f32 0.0, %v2760
      %v2762 = vpop.f32.mrf.mxu0
      %v2763 = vadd.f32 0.0, %v2762
      %2764 = vdwg.mxu0
      %v2765 = vadd.f32 %v2631, %v2686
      %v2766 = vadd.f32 %v2632, %v2688
      %v2767 = vadd.f32 %v2633, %v2691
      %v2768 = vadd.f32 %v2634, %v2693
      %v2769 = vadd.f32 %v2635, %v2696
      %v2770 = vadd.f32 %v2636, %v2698
      %v2771 = vadd.f32 %v2637, %v2701
      %v2772 = vadd.f32 %v2638, %v2703
      %v2773 = vadd.f32 %v2639, %v2706
      %v2774 = vadd.f32 %v2640, %v2708
      %v2775 = vadd.f32 %v2641, %v2711
      %v2776 = vadd.f32 %v2642, %v2713
      %v2777 = vadd.f32 %v2643, %v2716
      %v2778 = vadd.f32 %v2644, %v2718
      %v2779 = vadd.f32 %v2645, %v2721
      %v2780 = vadd.f32 %v2646, %v2723
      %v2781 = vadd.f32 %v2647, %v2726
      %v2782 = vadd.f32 %v2648, %v2728
      %v2783 = vadd.f32 %v2649, %v2731
      %v2784 = vadd.f32 %v2650, %v2733
      %v2785 = vadd.f32 %v2651, %v2736
      %v2786 = vadd.f32 %v2652, %v2738
      %v2787 = vadd.f32 %v2653, %v2741
      %v2788 = vadd.f32 %v2654, %v2743
      %v2789 = vadd.f32 %v2655, %v2746
      %v2790 = vadd.f32 %v2656, %v2748
      %v2791 = vadd.f32 %v2657, %v2751
      %v2792 = vadd.f32 %v2658, %v2753
      %v2793 = vadd.f32 %v2659, %v2756
      %v2794 = vadd.f32 %v2660, %v2758
      %v2795 = vadd.f32 %v2661, %v2761
      %v2796 = vadd.f32 %v2662, %v2763
      %s2797 = scalar_lea.vmem %s1, 32
      %v2798 = vld [vmem:[%s2797] sm:$0xf]
      %v2799 = vunpack.c.l.b16 %v1121
      %v2800 = vunpack.c.l.b16 %v1131
      %v2801 = vpack.c.b16 %v2800, %v2799
      %v2803 = vsel %vm1215, %v2801, 0
      %v2806 = vsel %vm1264, %v2798, 0
      %2808 = vmatpush.bf16.msra.mxu0 0
      %2809 = vmatpush.bf16.msra.mxu0 0
      %2810 = vmatpush.bf16.msra.mxu0 0
      %2811 = vmatpush.bf16.msra.mxu0 0
      %2812 = vmatpush.bf16.msra.mxu0 0
      %2813 = vmatpush.bf16.msra.mxu0 0
      %2814 = vmatpush.bf16.msra.mxu0 0
      %2815 = vmatpush.bf16.msra.mxu0 %v2806
      %2816 = vmatmul.bf16.gmra.mxu0 %v1631
      %v2817 = vpop.f32.mrf.mxu0
      %v2818 = vadd.f32 0.0, %v2817
      %v2819 = vpop.f32.mrf.mxu0
      %v2820 = vadd.f32 0.0, %v2819
      %2821 = vmatmul.bf16.gmra.mxu0 %v1634
      %v2822 = vpop.f32.mrf.mxu0
      %v2823 = vadd.f32 0.0, %v2822
      %v2824 = vpop.f32.mrf.mxu0
      %v2825 = vadd.f32 0.0, %v2824
      %2826 = vmatmul.bf16.gmra.mxu0 %v1637
      %v2827 = vpop.f32.mrf.mxu0
      %v2828 = vadd.f32 0.0, %v2827
      %v2829 = vpop.f32.mrf.mxu0
      %v2830 = vadd.f32 0.0, %v2829
      %2831 = vmatmul.bf16.gmra.mxu0 %v1640
      %v2832 = vpop.f32.mrf.mxu0
      %v2833 = vadd.f32 0.0, %v2832
      %v2834 = vpop.f32.mrf.mxu0
      %v2835 = vadd.f32 0.0, %v2834
      %2836 = vmatmul.bf16.gmra.mxu0 %v1643
      %v2837 = vpop.f32.mrf.mxu0
      %v2838 = vadd.f32 0.0, %v2837
      %v2839 = vpop.f32.mrf.mxu0
      %v2840 = vadd.f32 0.0, %v2839
      %2841 = vmatmul.bf16.gmra.mxu0 %v1646
      %v2842 = vpop.f32.mrf.mxu0
      %v2843 = vadd.f32 0.0, %v2842
      %v2844 = vpop.f32.mrf.mxu0
      %v2845 = vadd.f32 0.0, %v2844
      %2846 = vmatmul.bf16.gmra.mxu0 %v1649
      %v2847 = vpop.f32.mrf.mxu0
      %v2848 = vadd.f32 0.0, %v2847
      %v2849 = vpop.f32.mrf.mxu0
      %v2850 = vadd.f32 0.0, %v2849
      %2851 = vmatmul.bf16.gmra.mxu0 %v1652
      %v2852 = vpop.f32.mrf.mxu0
      %v2853 = vadd.f32 0.0, %v2852
      %v2854 = vpop.f32.mrf.mxu0
      %v2855 = vadd.f32 0.0, %v2854
      %2856 = vmatmul.bf16.gmra.mxu0 %v1655
      %v2857 = vpop.f32.mrf.mxu0
      %v2858 = vadd.f32 0.0, %v2857
      %v2859 = vpop.f32.mrf.mxu0
      %v2860 = vadd.f32 0.0, %v2859
      %2861 = vmatmul.bf16.gmra.mxu0 %v1658
      %v2862 = vpop.f32.mrf.mxu0
      %v2863 = vadd.f32 0.0, %v2862
      %v2864 = vpop.f32.mrf.mxu0
      %v2865 = vadd.f32 0.0, %v2864
      %2866 = vmatmul.bf16.gmra.mxu0 %v1661
      %v2867 = vpop.f32.mrf.mxu0
      %v2868 = vadd.f32 0.0, %v2867
      %v2869 = vpop.f32.mrf.mxu0
      %v2870 = vadd.f32 0.0, %v2869
      %2871 = vmatmul.bf16.gmra.mxu0 %v1664
      %v2872 = vpop.f32.mrf.mxu0
      %v2873 = vadd.f32 0.0, %v2872
      %v2874 = vpop.f32.mrf.mxu0
      %v2875 = vadd.f32 0.0, %v2874
      %2876 = vmatmul.bf16.gmra.mxu0 %v1667
      %v2877 = vpop.f32.mrf.mxu0
      %v2878 = vadd.f32 0.0, %v2877
      %v2879 = vpop.f32.mrf.mxu0
      %v2880 = vadd.f32 0.0, %v2879
      %2881 = vmatmul.bf16.gmra.mxu0 %v1670
      %v2882 = vpop.f32.mrf.mxu0
      %v2883 = vadd.f32 0.0, %v2882
      %v2884 = vpop.f32.mrf.mxu0
      %v2885 = vadd.f32 0.0, %v2884
      %2886 = vmatmul.bf16.gmra.mxu0 %v1673
      %v2887 = vpop.f32.mrf.mxu0
      %v2888 = vadd.f32 0.0, %v2887
      %v2889 = vpop.f32.mrf.mxu0
      %v2890 = vadd.f32 0.0, %v2889
      %2891 = vmatmul.bf16.gmra.mxu0 %v2803
      %v2892 = vpop.f32.mrf.mxu0
      %v2893 = vadd.f32 0.0, %v2892
      %v2894 = vpop.f32.mrf.mxu0
      %v2895 = vadd.f32 0.0, %v2894
      %2896 = vdwg.mxu0
      %v2897 = vadd.f32 %v2765, %v2818
      %v2898 = vadd.f32 %v2766, %v2820
      %v2899 = vadd.f32 %v2767, %v2823
      %v2900 = vadd.f32 %v2768, %v2825
      %v2901 = vadd.f32 %v2769, %v2828
      %v2902 = vadd.f32 %v2770, %v2830
      %v2903 = vadd.f32 %v2771, %v2833
      %v2904 = vadd.f32 %v2772, %v2835
      %v2905 = vadd.f32 %v2773, %v2838
      %v2906 = vadd.f32 %v2774, %v2840
      %v2907 = vadd.f32 %v2775, %v2843
      %v2908 = vadd.f32 %v2776, %v2845
      %v2909 = vadd.f32 %v2777, %v2848
      %v2910 = vadd.f32 %v2778, %v2850
      %v2911 = vadd.f32 %v2779, %v2853
      %v2912 = vadd.f32 %v2780, %v2855
      %v2913 = vadd.f32 %v2781, %v2858
      %v2914 = vadd.f32 %v2782, %v2860
      %v2915 = vadd.f32 %v2783, %v2863
      %v2916 = vadd.f32 %v2784, %v2865
      %v2917 = vadd.f32 %v2785, %v2868
      %v2918 = vadd.f32 %v2786, %v2870
      %v2919 = vadd.f32 %v2787, %v2873
      %v2920 = vadd.f32 %v2788, %v2875
      %v2921 = vadd.f32 %v2789, %v2878
      %v2922 = vadd.f32 %v2790, %v2880
      %v2923 = vadd.f32 %v2791, %v2883
      %v2924 = vadd.f32 %v2792, %v2885
      %v2925 = vadd.f32 %v2793, %v2888
      %v2926 = vadd.f32 %v2794, %v2890
      %v2927 = vadd.f32 %v2795, %v2893
      %v2928 = vadd.f32 %v2796, %v2895
      %v2929 = vld [vmem:[%s2] sm:$0x1]
      %v2931 = vperm.slane %v2929, 0
      %v2933 = vadd.f32 %v2897, %v2931
      %v2934 = vadd.f32 %v2898, %v2931
      %v2935 = vadd.f32 %v2899, %v2931
      %v2936 = vadd.f32 %v2900, %v2931
      %v2937 = vadd.f32 %v2901, %v2931
      %v2938 = vadd.f32 %v2902, %v2931
      %v2939 = vadd.f32 %v2903, %v2931
      %v2940 = vadd.f32 %v2904, %v2931
      %v2941 = vadd.f32 %v2905, %v2931
      %v2942 = vadd.f32 %v2906, %v2931
      %v2943 = vadd.f32 %v2907, %v2931
      %v2944 = vadd.f32 %v2908, %v2931
      %v2945 = vadd.f32 %v2909, %v2931
      %v2946 = vadd.f32 %v2910, %v2931
      %v2947 = vadd.f32 %v2911, %v2931
      %v2948 = vadd.f32 %v2912, %v2931
      %v2949 = vadd.f32 %v2913, %v2931
      %v2950 = vadd.f32 %v2914, %v2931
      %v2951 = vadd.f32 %v2915, %v2931
      %v2952 = vadd.f32 %v2916, %v2931
      %v2953 = vadd.f32 %v2917, %v2931
      %v2954 = vadd.f32 %v2918, %v2931
      %v2955 = vadd.f32 %v2919, %v2931
      %v2956 = vadd.f32 %v2920, %v2931
      %v2957 = vadd.f32 %v2921, %v2931
      %v2958 = vadd.f32 %v2922, %v2931
      %v2959 = vadd.f32 %v2923, %v2931
      %v2960 = vadd.f32 %v2924, %v2931
      %v2961 = vadd.f32 %v2925, %v2931
      %v2962 = vadd.f32 %v2926, %v2931
      %v2963 = vadd.f32 %v2927, %v2931
      %v2964 = vadd.f32 %v2928, %v2931
      %v2965 = vmax.f32 %v2933, 0.0
      %v2966 = vmax.f32 %v2934, 0.0
      %v2967 = vmax.f32 %v2935, 0.0
      %v2968 = vmax.f32 %v2936, 0.0
      %v2969 = vmax.f32 %v2937, 0.0
      %v2970 = vmax.f32 %v2938, 0.0
      %v2971 = vmax.f32 %v2939, 0.0
      %v2972 = vmax.f32 %v2940, 0.0
      %v2973 = vmax.f32 %v2941, 0.0
      %v2974 = vmax.f32 %v2942, 0.0
      %v2975 = vmax.f32 %v2943, 0.0
      %v2976 = vmax.f32 %v2944, 0.0
      %v2977 = vmax.f32 %v2945, 0.0
      %v2978 = vmax.f32 %v2946, 0.0
      %v2979 = vmax.f32 %v2947, 0.0
      %v2980 = vmax.f32 %v2948, 0.0
      %v2981 = vmax.f32 %v2949, 0.0
      %v2982 = vmax.f32 %v2950, 0.0
      %v2983 = vmax.f32 %v2951, 0.0
      %v2984 = vmax.f32 %v2952, 0.0
      %v2985 = vmax.f32 %v2953, 0.0
      %v2986 = vmax.f32 %v2954, 0.0
      %v2987 = vmax.f32 %v2955, 0.0
      %v2988 = vmax.f32 %v2956, 0.0
      %v2989 = vmax.f32 %v2957, 0.0
      %v2990 = vmax.f32 %v2958, 0.0
      %v2991 = vmax.f32 %v2959, 0.0
      %v2992 = vmax.f32 %v2960, 0.0
      %v2993 = vmax.f32 %v2961, 0.0
      %v2994 = vmax.f32 %v2962, 0.0
      %v2995 = vmax.f32 %v2963, 0.0
      %v2996 = vmax.f32 %v2964, 0.0
      %v2997 = vmin.f32 %v2965, 6.0
      %v2998 = vmin.f32 %v2966, 6.0
      %v2999 = vmin.f32 %v2967, 6.0
      %v3000 = vmin.f32 %v2968, 6.0
      %v3001 = vmin.f32 %v2969, 6.0
      %v3002 = vmin.f32 %v2970, 6.0
      %v3003 = vmin.f32 %v2971, 6.0
      %v3004 = vmin.f32 %v2972, 6.0
      %v3005 = vmin.f32 %v2973, 6.0
      %v3006 = vmin.f32 %v2974, 6.0
      %v3007 = vmin.f32 %v2975, 6.0
      %v3008 = vmin.f32 %v2976, 6.0
      %v3009 = vmin.f32 %v2977, 6.0
      %v3010 = vmin.f32 %v2978, 6.0
      %v3011 = vmin.f32 %v2979, 6.0
      %v3012 = vmin.f32 %v2980, 6.0
      %v3013 = vmin.f32 %v2981, 6.0
      %v3014 = vmin.f32 %v2982, 6.0
      %v3015 = vmin.f32 %v2983, 6.0
      %v3016 = vmin.f32 %v2984, 6.0
      %v3017 = vmin.f32 %v2985, 6.0
      %v3018 = vmin.f32 %v2986, 6.0
      %v3019 = vmin.f32 %v2987, 6.0
      %v3020 = vmin.f32 %v2988, 6.0
      %v3021 = vmin.f32 %v2989, 6.0
      %v3022 = vmin.f32 %v2990, 6.0
      %v3023 = vmin.f32 %v2991, 6.0
      %v3024 = vmin.f32 %v2992, 6.0
      %v3025 = vmin.f32 %v2993, 6.0
      %v3026 = vmin.f32 %v2994, 6.0
      %v3027 = vmin.f32 %v2995, 6.0
      %v3028 = vmin.f32 %v2996, 6.0
      %v3029 = vpack.c.bf16 %v2997, %v2997
      %v3030 = vpack.c.bf16 %v2998, %v2998
      %v3031 = vpack.c.bf16 %v2999, %v2999
      %v3032 = vpack.c.bf16 %v3000, %v3000
      %v3033 = vpack.c.bf16 %v3001, %v3001
      %v3034 = vpack.c.bf16 %v3002, %v3002
      %v3035 = vpack.c.bf16 %v3003, %v3003
      %v3036 = vpack.c.bf16 %v3004, %v3004
      %v3037 = vpack.c.bf16 %v3005, %v3005
      %v3038 = vpack.c.bf16 %v3006, %v3006
      %v3039 = vpack.c.bf16 %v3007, %v3007
      %v3040 = vpack.c.bf16 %v3008, %v3008
      %v3041 = vpack.c.bf16 %v3009, %v3009
      %v3042 = vpack.c.bf16 %v3010, %v3010
      %v3043 = vpack.c.bf16 %v3011, %v3011
      %v3044 = vpack.c.bf16 %v3012, %v3012
      %v3045 = vpack.c.bf16 %v3013, %v3013
      %v3046 = vpack.c.bf16 %v3014, %v3014
      %v3047 = vpack.c.bf16 %v3015, %v3015
      %v3048 = vpack.c.bf16 %v3016, %v3016
      %v3049 = vpack.c.bf16 %v3017, %v3017
      %v3050 = vpack.c.bf16 %v3018, %v3018
      %v3051 = vpack.c.bf16 %v3019, %v3019
      %v3052 = vpack.c.bf16 %v3020, %v3020
      %v3053 = vpack.c.bf16 %v3021, %v3021
      %v3054 = vpack.c.bf16 %v3022, %v3022
      %v3055 = vpack.c.bf16 %v3023, %v3023
      %v3056 = vpack.c.bf16 %v3024, %v3024
      %v3057 = vpack.c.bf16 %v3025, %v3025
      %v3058 = vpack.c.bf16 %v3026, %v3026
      %v3059 = vpack.c.bf16 %v3027, %v3027
      %v3060 = vpack.c.bf16 %v3028, %v3028
      %vm3061 = vcmask 60416
      %3062 = vst.msk [vmem:[%s170] sm:$0xf] %vm3061, %v3029
      %3063 = vst.msk [vmem:[%s170 + $0x4] sm:$0xf] %vm3061, %v3030
      %3064 = vst.msk [vmem:[%s170 + $0x8] sm:$0xf] %vm3061, %v3031
      %3065 = vst.msk [vmem:[%s170 + $0xc] sm:$0xf] %vm3061, %v3032
      %3066 = vst.msk [vmem:[%s170 + $0x10] sm:$0xf] %vm3061, %v3033
      %3067 = vst.msk [vmem:[%s170 + $0x14] sm:$0xf] %vm3061, %v3034
      %3068 = vst.msk [vmem:[%s170 + $0x18] sm:$0xf] %vm3061, %v3035
      %3069 = vst.msk [vmem:[%s170 + $0x1c] sm:$0xf] %vm3061, %v3036
      %3070 = vst.msk [vmem:[%s170 + $0x20] sm:$0xf] %vm3061, %v3037
      %3071 = vst.msk [vmem:[%s170 + $0x24] sm:$0xf] %vm3061, %v3038
      %3072 = vst.msk [vmem:[%s170 + $0x28] sm:$0xf] %vm3061, %v3039
      %3073 = vst.msk [vmem:[%s170 + $0x2c] sm:$0xf] %vm3061, %v3040
      %3074 = vst.msk [vmem:[%s170 + $0x30] sm:$0xf] %vm3061, %v3041
      %3075 = vst.msk [vmem:[%s170 + $0x34] sm:$0xf] %vm3061, %v3042
      %3076 = vst.msk [vmem:[%s170 + $0x38] sm:$0xf] %vm3061, %v3043
      %3077 = vst.msk [vmem:[%s170 + $0x3c] sm:$0xf] %vm3061, %v3044
      %3078 = vst.msk [vmem:[%s170 + $0x40] sm:$0xf] %vm3061, %v3045
      %3079 = vst.msk [vmem:[%s170 + $0x44] sm:$0xf] %vm3061, %v3046
      %3080 = vst.msk [vmem:[%s170 + $0x48] sm:$0xf] %vm3061, %v3047
      %3081 = vst.msk [vmem:[%s170 + $0x4c] sm:$0xf] %vm3061, %v3048
      %3082 = vst.msk [vmem:[%s170 + $0x50] sm:$0xf] %vm3061, %v3049
      %3083 = vst.msk [vmem:[%s170 + $0x54] sm:$0xf] %vm3061, %v3050
      %3084 = vst.msk [vmem:[%s170 + $0x58] sm:$0xf] %vm3061, %v3051
      %3085 = vst.msk [vmem:[%s170 + $0x5c] sm:$0xf] %vm3061, %v3052
      %3086 = vst.msk [vmem:[%s170 + $0x60] sm:$0xf] %vm3061, %v3053
      %3087 = vst.msk [vmem:[%s170 + $0x64] sm:$0xf] %vm3061, %v3054
      %3088 = vst.msk [vmem:[%s170 + $0x68] sm:$0xf] %vm3061, %v3055
      %3089 = vst.msk [vmem:[%s170 + $0x6c] sm:$0xf] %vm3061, %v3056
      %3090 = vst.msk [vmem:[%s170 + $0x70] sm:$0xf] %vm3061, %v3057
      %3091 = vst.msk [vmem:[%s170 + $0x74] sm:$0xf] %vm3061, %v3058
      %3092 = vst.msk [vmem:[%s170 + $0x78] sm:$0xf] %vm3061, %v3059
      %3093 = vst.msk [vmem:[%s170 + $0x7c] sm:$0xf] %vm3061, %v3060
      %p3094 = scmp.lt.s32.totalorder %s14, 1
      %s3095 = scalar_select %p3094, %s14, 1
      %s3096 = smul.addr %s3095, 32
      %s3097 = smul.addr %s3096, 4
      %s3098 = scalar_lea.vmem %s3, %s3097
      // Predicated region
      $region33: #{tpu_custom_call.1} parent=31 // pred_check
        %p3099 = pneg %p100
      $region34: #{tpu_custom_call.1} parent=31 // pred_check_branch
        %3101 = sbr.rel (%p3099) target = $region36
      $region35: #{tpu_custom_call.1} parent=31 // pred_region
        _
      $region36: #{tpu_custom_call.1} parent=31 // pred_fallthru
        _
    $region32: #{tpu_custom_call.1} parent=5 // pred_fallthru
      _
    %p3102 = scmp.le.s32.totalorder 2, %s9
    // Predicated region
    $region37: #{tpu_custom_call.1} parent=5 // pred_check
      %p3103 = pneg %p3102
    $region38: #{tpu_custom_call.1} parent=5 // pred_check_branch
      %3105 = sbr.rel (%p3103) target = $region40
    $region39: #{tpu_custom_call.1} parent=5 // pred_region
      %s3106 = ssub.s32 %s9, 2
      // Predicated region
      $region41: #{tpu_custom_call.1} parent=39 // pred_check
        %p3107 = pneg %p106
      $region42: #{tpu_custom_call.1} parent=39 // pred_check_branch
        %3109 = sbr.rel (%p3107) target = $region44
      $region43: #{tpu_custom_call.1} parent=39 // pred_region
        %p3110 = scmp.lt.s32.totalorder %s15, 1
        %s3111 = scalar_select %p3110, %s15, 1
        %s3112 = smul.addr %s3111, 32
        %s3113 = smul.addr %s3112, 4
        %s3114 = scalar_lea.vmem %s3, %s3113
      $region44: #{tpu_custom_call.1} parent=39 // pred_fallthru
        _
    $region40: #{tpu_custom_call.1} parent=5 // pred_fallthru
      _
  $region6: #{tpu_custom_call.1} parent=0 // loop_footer
    %s13 = sadd.s32 1, %s9
  $region7: #{tpu_custom_call.1} parent=0 // loop_footer_branch
    %8 = sbr.rel target = $region3
  $region8: #{tpu_custom_call.1} parent=0 // loop_exit
    _

</llo_original>
